<compile_context>
chip_gen: v5e
topology: v5e:2x2
jax: 0.10.0
libtpu: 0.0.40
codegen_flags: <defaults>
</compile_context>

<pallas_src>
import functools
import math

import jax
import jax.numpy as jnp
from jax.experimental import pallas as pl
from jax.experimental.pallas import tpu as pltpu

DEFAULT_TILE_N = 512
DEFAULT_TILE_K = 512

_VMEM_LIMIT = 32 * 1024 * 1024           # explicit scoped budget, safe on all gens
_XW_RESIDENT_BUDGET = 24 * 1024 * 1024   # kernel-1 single-pass VMEM estimate cap
_AGG_RESIDENT_BUDGET = 28 * 1024 * 1024  # kernel-2 resident-support estimate cap


def _round_up(x, m):
    return ((x + m - 1) // m) * m


def choose_tiles(n, tile_n=DEFAULT_TILE_N, tile_k=DEFAULT_TILE_K):
    """Pick row/reduction tiles and padded node count for a graph of n nodes."""
    # Keep >= 2 row tiles when possible so the "parallel" row-tile axis gives
    # work to both TensorCores on v7x (free 2x on small graphs).
    while tile_n > 256 and _round_up(n, max(tile_n, tile_k)) // tile_n < 2:
        tile_n //= 2
    # power-of-two tiles => lcm == max; avoids padding blow-up.
    n_pad = _round_up(n, math.lcm(tile_n, tile_k))
    return tile_n, tile_k, n_pad


def prepare_adjacency(adj, n_pad):
    """Hoisted adjacency prep (cast to bf16 + zero pad): do once, reuse."""
    n = adj.shape[0]
    return jnp.pad(adj.astype(jnp.bfloat16), ((0, n_pad - n), (0, n_pad - n)))


# ---------------------------------------------------------------------------
# Kernel 1a: support = X @ W, weight fully VMEM-resident, no K grid axis.
# ---------------------------------------------------------------------------
def _xw_resident_kernel(x_ref, w_ref, sup_ref):
    sup_ref[...] = jnp.dot(
        x_ref[...], w_ref[...], preferred_element_type=jnp.float32
    ).astype(sup_ref.dtype)


# ---------------------------------------------------------------------------
# Kernel 1b (fallback for very large in_features): K-tiled, f32 accumulator.
# ---------------------------------------------------------------------------
def _xw_blocked_kernel(x_ref, w_ref, sup_ref, acc_ref):
    @pl.when(pl.program_id(1) == 0)
    def _():
        acc_ref[...] = jnp.zeros_like(acc_ref)

    acc_ref[...] += jnp.dot(
        x_ref[...], w_ref[...], preferred_element_type=jnp.float32
    )

    @pl.when(pl.program_id(1) == pl.num_programs(1) - 1)
    def _():
        sup_ref[...] = acc_ref[...].astype(sup_ref.dtype)


# ---------------------------------------------------------------------------
# Kernel 2: out = adj @ support + bias,  grid = (row tiles, K tiles over N).
# Bias folded into accumulator init; support either VMEM-resident (sliced by
# the K index in-kernel) or K-blocked via its BlockSpec.
# ---------------------------------------------------------------------------
def _aggregate_kernel(adj_ref, sup_ref, bias_ref, out_ref, acc_ref, *,
                      tile_k, support_resident):
    k = pl.program_id(1)

    @pl.when(k == 0)
    def _():
        acc_ref[...] = jnp.broadcast_to(bias_ref[...], acc_ref.shape)

    if support_resident:
        off = pl.multiple_of(k * tile_k, tile_k)
        sup = sup_ref[pl.ds(off, tile_k), :]
    else:
        sup = sup_ref[...]

    acc_ref[...] += jnp.dot(adj_ref[...], sup, preferred_element_type=jnp.float32)

    @pl.when(k == pl.num_programs(1) - 1)
    def _():
        out_ref[...] = acc_ref[...].astype(out_ref.dtype)


@functools.partial(jax.jit, static_argnames=("tile_n", "tile_k"))
def graph_convolution(x, adj_p, weight, bias, *,
                      tile_n=DEFAULT_TILE_N, tile_k=DEFAULT_TILE_K):
    """Pallas GCN layer forward: adj @ (x @ weight) + bias (f32 accumulation).

    `adj_p` is the bf16, zero-padded (n_pad, n_pad) adjacency produced by
    prepare_adjacency (cast/pad hoisted out of the per-layer call).
    """
    n, in_features = x.shape
    out_features = weight.shape[1]
    n_pad = adj_p.shape[0]
    assert n_pad % tile_n == 0 and n_pad % tile_k == 0 and n_pad >= n

    f_pad = _round_up(out_features, 128)  # lane-dense output stores

    # ---- kernel 1 path selection (single-pass vs K-tiled) -------------------
    kin_resident = _round_up(in_features, 128)
    xw_vmem = (2 * tile_n * kin_resident * 2      # x double-buffered (bf16)
               + 2 * kin_resident * f_pad * 2     # weight (bf16)
               + 2 * tile_n * f_pad * 2)          # support out (bf16)
    xw_single_pass = xw_vmem <= _XW_RESIDENT_BUDGET
    kin_pad = kin_resident if xw_single_pass else _round_up(in_features, tile_k)

    # bf16 at the kernel boundary; zero padding keeps the math exact.
    x_p = jnp.pad(x.astype(jnp.bfloat16),
                  ((0, n_pad - n), (0, kin_pad - in_features)))
    w_p = jnp.pad(weight.astype(jnp.bfloat16),
                  ((0, kin_pad - in_features), (0, f_pad - out_features)))
    bias_p = jnp.pad(bias.astype(jnp.float32).reshape(1, out_features),
                     ((0, 0), (0, f_pad - out_features)))
    adj_p = adj_p.astype(jnp.bfloat16)  # no-op if already prepared

    # --- support = X @ W ------------------------------------------------------
    if xw_single_pass:
        support = pl.pallas_call(
            _xw_resident_kernel,
            out_shape=jax.ShapeDtypeStruct((n_pad, f_pad), jnp.bfloat16),
            grid_spec=pltpu.PrefetchScalarGridSpec(
                num_scalar_prefetch=0,
                grid=(n_pad // tile_n,),
                in_specs=[
                    pl.BlockSpec((tile_n, kin_pad), lambda i: (i, 0)),
                    pl.BlockSpec((kin_pad, f_pad), lambda i: (0, 0)),
                ],
                out_specs=pl.BlockSpec((tile_n, f_pad), lambda i: (i, 0)),
            ),
            compiler_params=pltpu.CompilerParams(
                dimension_semantics=("parallel",),
                vmem_limit_bytes=_VMEM_LIMIT,
            ),
        )(x_p, w_p)
    else:
        support = pl.pallas_call(
            _xw_blocked_kernel,
            out_shape=jax.ShapeDtypeStruct((n_pad, f_pad), jnp.bfloat16),
            grid_spec=pltpu.PrefetchScalarGridSpec(
                num_scalar_prefetch=0,
                grid=(n_pad // tile_n, kin_pad // tile_k),
                in_specs=[
                    pl.BlockSpec((tile_n, tile_k), lambda i, k: (i, k)),
                    pl.BlockSpec((tile_k, f_pad), lambda i, k: (k, 0)),
                ],
                out_specs=pl.BlockSpec((tile_n, f_pad), lambda i, k: (i, 0)),
                scratch_shapes=[pltpu.VMEM((tile_n, f_pad), jnp.float32)],
            ),
            compiler_params=pltpu.CompilerParams(
                dimension_semantics=("parallel", "arbitrary"),
                vmem_limit_bytes=_VMEM_LIMIT,
            ),
        )(x_p, w_p)

    # --- output = adj @ support + bias ---------------------------------------
    agg_vmem = (2 * tile_n * tile_k * 2            # adj double-buffered (bf16)
                + 2 * n_pad * f_pad * 2            # resident support (bf16)
                + 2 * f_pad * 4                    # bias (f32)
                + 2 * tile_n * f_pad * 4           # out double-buffered (f32)
                + tile_n * f_pad * 4)              # f32 accumulator scratch
    support_resident = agg_vmem <= _AGG_RESIDENT_BUDGET

    if support_resident:
        sup_spec = pl.BlockSpec((n_pad, f_pad), lambda i, k: (0, 0))
    else:
        sup_spec = pl.BlockSpec((tile_k, f_pad), lambda i, k: (k, 0))

    out_pad = pl.pallas_call(
        functools.partial(_aggregate_kernel, tile_k=tile_k,
                          support_resident=support_resident),
        out_shape=jax.ShapeDtypeStruct((n_pad, f_pad), jnp.float32),
        grid_spec=pltpu.PrefetchScalarGridSpec(
            num_scalar_prefetch=0,
            grid=(n_pad // tile_n, n_pad // tile_k),
            in_specs=[
                pl.BlockSpec((tile_n, tile_k), lambda i, k: (i, k)),
                sup_spec,
                pl.BlockSpec((1, f_pad), lambda i, k: (0, 0)),
            ],
            out_specs=pl.BlockSpec((tile_n, f_pad), lambda i, k: (i, 0)),
            scratch_shapes=[pltpu.VMEM((tile_n, f_pad), jnp.float32)],
        ),
        compiler_params=pltpu.CompilerParams(
            dimension_semantics=("parallel", "arbitrary"),
            vmem_limit_bytes=_VMEM_LIMIT,
        ),
    )(adj_p, support, bias_p)

    # Padded rows contain only `bias` (sliced off here); don't reuse out_pad.
    return out_pad[:n, :out_features]


if __name__ == "__main__":
    # Small, deterministic example (GCN layer; shapes exercise the padding
    # paths: N not a tile multiple, out_features < 128).
    N = 300
    IN_FEATURES = 200
    OUT_FEATURES = 48

    key = jax.random.PRNGKey(0)
    k_x, k_adj, k_w, k_b = jax.random.split(key, 4)

    x = jax.random.normal(k_x, (N, IN_FEATURES), dtype=jnp.float32)
    # Dense "sparse-ish" adjacency: random mask + self loops, row-normalized
    # (typical GCN preprocessing).
    adj_raw = (jax.random.uniform(k_adj, (N, N)) < 0.05).astype(jnp.float32)
    adj_raw = adj_raw + jnp.eye(N, dtype=jnp.float32)
    adj = adj_raw / jnp.sum(adj_raw, axis=1, keepdims=True)

    # Parameters, init matching reset_parameters(): uniform(-stdv, stdv),
    # stdv = 1/sqrt(out_features).
    stdv = 1.0 / jnp.sqrt(jnp.float32(OUT_FEATURES))
    weight = jax.random.uniform(
        k_w, (IN_FEATURES, OUT_FEATURES), minval=-stdv, maxval=stdv,
        dtype=jnp.float32,
    )
    bias = jax.random.uniform(
        k_b, (OUT_FEATURES,), minval=-stdv, maxval=stdv, dtype=jnp.float32
    )

    # Adjacency prep hoisted out of the per-layer call (reuse across layers).
    tile_n, tile_k, n_pad = choose_tiles(N)
    adj_p = prepare_adjacency(adj, n_pad)

    out = graph_convolution(x, adj_p, weight, bias, tile_n=tile_n, tile_k=tile_k)
    out = jax.block_until_ready(out)

    # Reference check against plain JAX f32 (same semantics as torch forward).
    # bf16 kernel inputs + f32 accumulation => loose tolerance vs f32 ref.
    ref = adj @ (x @ weight) + bias
    assert out.shape == (N, OUT_FEATURES)
    assert jnp.allclose(out, ref, atol=5e-2, rtol=5e-2), (
        float(jnp.max(jnp.abs(out - ref)))
    )

    print("KERNEL_OK")
</pallas_src>

<mosaic_0001>
module attributes {stable_mosaic.version = 11 : i64} {
  func.func @_xw_resident_kernel(%arg0: i32, %arg1: memref<256x256xbf16, #tpu.memory_space<vmem>>, %arg2: memref<256x128xbf16, #tpu.memory_space<vmem>>, %arg3: memref<256x128xbf16, #tpu.memory_space<vmem>>) attributes {dimension_semantics = [#tpu.dimension_semantics<parallel>], iteration_bounds = array<i64: 2>, scalar_prefetch = 0 : i64, scratch_operands = 0 : i64, tpu.core_type = #tpu.core_type<tc>, window_params = [{transform_indices = @transform_0, window_bounds = array<i64: 256, 256>}, {pipeline_mode = #tpu.pipeline_mode<synchronous>, transform_indices = @transform_1, window_bounds = array<i64: 256, 128>}, {transform_indices = @transform_2, window_bounds = array<i64: 256, 128>}]} {
    %c0 = arith.constant 0 : index
    %c0_0 = arith.constant 0 : index
    %0 = vector.load %arg1[%c0, %c0_0] : memref<256x256xbf16, #tpu.memory_space<vmem>>, vector<256x256xbf16>
    %c0_1 = arith.constant 0 : index
    %c0_2 = arith.constant 0 : index
    %1 = vector.load %arg2[%c0_1, %c0_2] : memref<256x128xbf16, #tpu.memory_space<vmem>>, vector<256x128xbf16>
    %cst = arith.constant dense<0.000000e+00> : vector<256x128xf32>
    %2 = tpu.matmul %0, %1, %cst {dimension_numbers = #tpu.dot_dimension_numbers<[1], [0], [0], [1], [0, 0, 1, 1], [], []>} : vector<256x256xbf16>, vector<256x128xbf16>, vector<256x128xf32> -> vector<256x128xf32>
    %3 = arith.truncf %2 : vector<256x128xf32> to vector<256x128xbf16>
    %c0_3 = arith.constant 0 : index
    %c0_4 = arith.constant 0 : index
    %4 = vector.load %arg3[%c0_3, %c0_4] : memref<256x128xbf16, #tpu.memory_space<vmem>>, vector<256x128xbf16>
    tpu.vector_store %arg3[%c0_3, %c0_4], %3 {strides = array<i32>} : memref<256x128xbf16, #tpu.memory_space<vmem>>, vector<256x128xbf16>,
    return
  }
  func.func @transform_0(%arg0: i32) -> (i32, i32) {
    %c0_i32 = arith.constant 0 : i32
    %c0_i32_0 = arith.constant 0 : i32
    return %arg0, %c0_i32 : i32, i32
  }
  func.func @transform_1(%arg0: i32) -> (i32, i32) {
    %c0_i32 = arith.constant 0 : i32
    %c0_i32_0 = arith.constant 0 : i32
    %c0_i32_1 = arith.constant 0 : i32
    return %c0_i32, %c0_i32_0 : i32, i32
  }
  func.func @transform_2(%arg0: i32) -> (i32, i32) {
    %c0_i32 = arith.constant 0 : i32
    %c0_i32_0 = arith.constant 0 : i32
    return %arg0, %c0_i32 : i32, i32
  }
}

module attributes {stable_mosaic.version = 11 : i64} {
  func.func @_aggregate_kernel(%arg0: i32, %arg1: i32, %arg2: memref<256x512xbf16, #tpu.memory_space<vmem>>, %arg3: memref<512x128xbf16, #tpu.memory_space<vmem>>, %arg4: memref<1x128xf32, #tpu.memory_space<vmem>>, %arg5: memref<256x128xf32, #tpu.memory_space<vmem>>, %arg6: memref<256x128xf32, #tpu.memory_space<vmem>>) attributes {dimension_semantics = [#tpu.dimension_semantics<parallel>, #tpu.dimension_semantics<arbitrary>], iteration_bounds = array<i64: 2, 1>, scalar_prefetch = 0 : i64, scratch_operands = 1 : i64, tpu.core_type = #tpu.core_type<tc>, window_params = [{transform_indices = @transform_0, window_bounds = array<i64: 256, 512>}, {pipeline_mode = #tpu.pipeline_mode<synchronous>, transform_indices = @transform_1, window_bounds = array<i64: 512, 128>}, {pipeline_mode = #tpu.pipeline_mode<synchronous>, transform_indices = @transform_2, window_bounds = array<i64: 1, 128>}, {transform_indices = @transform_3, window_bounds = array<i64: 256, 128>}]} {
    %c0_i32 = arith.constant 0 : i32
    %0 = arith.cmpi eq, %arg1, %c0_i32 : i32
    %1 = arith.extui %0 : i1 to i32
    %c0_i32_0 = arith.constant 0 : i32
    %2 = arith.cmpi ne, %1, %c0_i32_0 : i32
    scf.if %2 {
      %c0_9 = arith.constant 0 : index
      %c0_10 = arith.constant 0 : index
      %15 = vector.load %arg4[%c0_9, %c0_10] : memref<1x128xf32, #tpu.memory_space<vmem>>, vector<1x128xf32>
      %16 = vector.shape_cast %15 : vector<1x128xf32> to vector<1x128xf32>
      %17 = vector.broadcast %16 : vector<1x128xf32> to vector<256x128xf32>
      %c0_11 = arith.constant 0 : index
      %c0_12 = arith.constant 0 : index
      %18 = vector.load %arg6[%c0_11, %c0_12] : memref<256x128xf32, #tpu.memory_space<vmem>>, vector<256x128xf32>
      tpu.vector_store %arg6[%c0_11, %c0_12], %17 {strides = array<i32>} : memref<256x128xf32, #tpu.memory_space<vmem>>, vector<256x128xf32>,
    } else {
    }
    %c512_i32 = arith.constant 512 : i32
    %3 = arith.muli %arg1, %c512_i32 : i32
    %4 = tpu.assume_multiple %3, 512 : i32
    %5 = arith.index_cast %4 : i32 to index
    %c0 = arith.constant 0 : index
    %6 = vector.load %arg3[%5, %c0] : memref<512x128xbf16, #tpu.memory_space<vmem>>, vector<512x128xbf16>
    %c0_1 = arith.constant 0 : index
    %c0_2 = arith.constant 0 : index
    %7 = vector.load %arg6[%c0_1, %c0_2] : memref<256x128xf32, #tpu.memory_space<vmem>>, vector<256x128xf32>
    %c0_3 = arith.constant 0 : index
    %c0_4 = arith.constant 0 : index
    %8 = vector.load %arg2[%c0_3, %c0_4] : memref<256x512xbf16, #tpu.memory_space<vmem>>, vector<256x512xbf16>
    %cst = arith.constant dense<0.000000e+00> : vector<256x128xf32>
    %9 = tpu.matmul %8, %6, %cst {dimension_numbers = #tpu.dot_dimension_numbers<[1], [0], [0], [1], [0, 0, 1, 1], [], []>} : vector<256x512xbf16>, vector<512x128xbf16>, vector<256x128xf32> -> vector<256x128xf32>
    %10 = arith.addf %7, %9 : vector<256x128xf32>
    %c0_5 = arith.constant 0 : index
    %c0_6 = arith.constant 0 : index
    %11 = vector.load %arg6[%c0_5, %c0_6] : memref<256x128xf32, #tpu.memory_space<vmem>>, vector<256x128xf32>
    tpu.vector_store %arg6[%c0_5, %c0_6], %10 {strides = array<i32>} : memref<256x128xf32, #tpu.memory_space<vmem>>, vector<256x128xf32>,
    %c0_i32_7 = arith.constant 0 : i32
    %12 = arith.cmpi eq, %arg1, %c0_i32_7 : i32
    %13 = arith.extui %12 : i1 to i32
    %c0_i32_8 = arith.constant 0 : i32
    %14 = arith.cmpi ne, %13, %c0_i32_8 : i32
    scf.if %14 {
      %c0_9 = arith.constant 0 : index
      %c0_10 = arith.constant 0 : index
      %15 = vector.load %arg6[%c0_9, %c0_10] : memref<256x128xf32, #tpu.memory_space<vmem>>, vector<256x128xf32>
      %c0_11 = arith.constant 0 : index
      %c0_12 = arith.constant 0 : index
      %16 = vector.load %arg5[%c0_11, %c0_12] : memref<256x128xf32, #tpu.memory_space<vmem>>, vector<256x128xf32>
      tpu.vector_store %arg5[%c0_11, %c0_12], %15 {strides = array<i32>} : memref<256x128xf32, #tpu.memory_space<vmem>>, vector<256x128xf32>,
    } else {
    }
    return
  }
  func.func @transform_0(%arg0: i32, %arg1: i32) -> (i32, i32) {
    %c0_i32 = arith.constant 0 : i32
    return %arg0, %arg1 : i32, i32
  }
  func.func @transform_1(%arg0: i32, %arg1: i32) -> (i32, i32) {
    %c0_i32 = arith.constant 0 : i32
    %c0_i32_0 = arith.constant 0 : i32
    %c0_i32_1 = arith.constant 0 : i32
    return %c0_i32, %c0_i32_0 : i32, i32
  }
  func.func @transform_2(%arg0: i32, %arg1: i32) -> (i32, i32) {
    %c0_i32 = arith.constant 0 : i32
    %c0_i32_0 = arith.constant 0 : i32
    %c0_i32_1 = arith.constant 0 : i32
    return %c0_i32, %c0_i32_0 : i32, i32
  }
  func.func @transform_3(%arg0: i32, %arg1: i32) -> (i32, i32) {
    %c0_i32 = arith.constant 0 : i32
    %c0_i32_0 = arith.constant 0 : i32
    return %arg0, %c0_i32 : i32, i32
  }
}

</mosaic_0001>

<llo_original>
// kernel: graph_convolution.2
$region0: #{graph_convolution.2}
  #allocation0 [shape = 'u32[]', space=smem, size = 0x4, offset = 0x4, fixed_abs, tag = 'smem constant byte address 0x4 - core index']
  #allocation1 [shape = 'u32[72,128]{1,0:T(1,128)}', space=vmem, size = 0x9000, scoped, tag = 'internal scratch']
  %s0 = inlined_call_operand.vmem [shape: bf16[512,256], index: 0, kind: input, shape index: {}]
  %s1 = inlined_call_operand.vmem [shape: bf16[256,128], index: 1, kind: input, shape index: {}]
  %s2 = inlined_call_operand.vmem [shape: bf16[512,128], index: 2, kind: output, shape index: {}]
  %s3 = sld [smem:[#allocation0]]
  $region41: #{graph_convolution.2} parent=0
    _
  %s5 = ssub.s32 1, %s3
  %s6 = scalar_select 0, %s5, %s3
  loop: start=0, step=1, limit=4
  $region2: #{graph_convolution.2} parent=0 // loop_pre_header
    _
  $region3: #{graph_convolution.2} parent=0 // loop_header
    %s8 = sphi 0, %s12
    %p9 = scmp.ge.s32.totalorder %s8, 4
    %s18 = sphi 0, %s20
    %s21 = sphi 0, %s18
    %s22 = sphi 0, %s21
    %s38 = sphi 0, %s22
    %s42 = sphi 0, %s42
    %s44 = sphi 0, %s42
    %s45 = sphi 0, %s44
    %s59 = sphi 0, %s45
    %s65 = sphi 0, %s67
    %s68 = sphi 0, %s65
    %s69 = sphi 0, %s68
    %s85 = sphi 0, %s69
  $region4: #{graph_convolution.2} parent=0 // loop_header_branch
    %11 = sbr.rel (%p9) target = $region8
  $region5: #{graph_convolution.2} parent=0 // loop_body
    %s13 = ssub.s32 %s8, 1
    %s14 = ssub.s32 %s8, 2
    %s15 = sadd.s32 %s8, 1
    %s16 = ssub.s32 %s8, %s15
    %p17 = scmp.eq.s32.totalorder %s16, 0
    %s19 = sadd.s32 %s18, 1
    %s20 = scalar_select %p17, %s18, %s19
    %p23 = pneg %p17
    %p24 = scmp.eq.s32.totalorder %s8, 1
    %p25 = por %p23, %p24
    %p26 = scmp.ne.s32.totalorder %s18, %s21
    %p27 = scmp.eq.s32.totalorder %s8, 0
    %p28 = por %p26, %p27
    %p29 = scmp.ne.s32.totalorder %s18, %s21
    %p30 = scmp.eq.s32.totalorder %s13, 1
    %p31 = por %p29, %p30
    %p32 = scmp.ne.s32.totalorder %s21, %s22
    %p33 = scmp.eq.s32.totalorder %s13, 0
    %p34 = por %p32, %p33
    %p35 = scmp.ne.s32.totalorder %s21, %s22
    %p36 = scmp.eq.s32.totalorder %s14, 1
    %p37 = por %p35, %p36
    %p39 = scmp.ne.s32.totalorder %s22, %s38
    %p40 = scmp.eq.s32.totalorder %s14, 0
    %p41 = por %p39, %p40
    %s43 = sadd.s32 %s42, 1
    %p46 = scmp.eq.s32.totalorder %s8, 1
    %p47 = scmp.ne.s32.totalorder %s42, %s44
    %p48 = scmp.eq.s32.totalorder %s8, 0
    %p49 = por %p47, %p48
    %p50 = scmp.ne.s32.totalorder %s42, %s44
    %p51 = scmp.eq.s32.totalorder %s13, 1
    %p52 = por %p50, %p51
    %p53 = scmp.ne.s32.totalorder %s44, %s45
    %p54 = scmp.eq.s32.totalorder %s13, 0
    %p55 = por %p53, %p54
    %p56 = scmp.ne.s32.totalorder %s44, %s45
    %p57 = scmp.eq.s32.totalorder %s14, 1
    %p58 = por %p56, %p57
    %p60 = scmp.ne.s32.totalorder %s45, %s59
    %p61 = scmp.eq.s32.totalorder %s14, 0
    %p62 = por %p60, %p61
    %s63 = ssub.s32 %s8, %s15
    %p64 = scmp.eq.s32.totalorder %s63, 0
    %s66 = sadd.s32 %s65, 1
    %s67 = scalar_select %p64, %s65, %s66
    %p70 = pneg %p64
    %p71 = scmp.eq.s32.totalorder %s8, 1
    %p72 = por %p70, %p71
    %p73 = scmp.ne.s32.totalorder %s65, %s68
    %p74 = scmp.eq.s32.totalorder %s8, 0
    %p75 = por %p73, %p74
    %p76 = scmp.ne.s32.totalorder %s65, %s68
    %p77 = scmp.eq.s32.totalorder %s13, 1
    %p78 = por %p76, %p77
    %p79 = scmp.ne.s32.totalorder %s68, %s69
    %p80 = scmp.eq.s32.totalorder %s13, 0
    %p81 = por %p79, %p80
    %p82 = scmp.ne.s32.totalorder %s68, %s69
    %p83 = scmp.eq.s32.totalorder %s14, 1
    %p84 = por %p82, %p83
    %p86 = scmp.ne.s32.totalorder %s69, %s85
    %p87 = scmp.eq.s32.totalorder %s14, 0
    %p88 = por %p86, %p87
    %p89 = scmp.le.s32.totalorder 1, %s8
    %p90 = scmp.lt.s32.totalorder %s8, 3
    %p91 = pnand %p89, %p90
    %p92 = pneg %p91
    // Predicated region
    $region9: #{graph_convolution.2} parent=5 // pred_check
      _
    $region10: #{graph_convolution.2} parent=5 // pred_check_branch
      %94 = sbr.rel (%p91) target = $region12
    $region11: #{graph_convolution.2} parent=5 // pred_region
      %s95 = ssub.s32 %s8, 1
      // Predicated region
      $region13: #{graph_convolution.2} parent=11 // pred_check
        %p96 = pneg %p55
      $region14: #{graph_convolution.2} parent=11 // pred_check_branch
        %98 = sbr.rel (%p96) target = $region16
      $region15: #{graph_convolution.2} parent=11 // pred_region
        _
      $region16: #{graph_convolution.2} parent=11 // pred_fallthru
        _
    $region12: #{graph_convolution.2} parent=5 // pred_fallthru
      _
    %p99 = scmp.lt.s32.totalorder %s8, 2
    // Predicated region
    $region17: #{graph_convolution.2} parent=5 // pred_check
      %p100 = pneg %p99
    $region18: #{graph_convolution.2} parent=5 // pred_check_branch
      %102 = sbr.rel (%p100) target = $region20
    $region19: #{graph_convolution.2} parent=5 // pred_region
      // Predicated region
      $region21: #{graph_convolution.2} parent=19 // pred_check
        %p103 = pneg %p28
      $region22: #{graph_convolution.2} parent=19 // pred_check_branch
        %105 = sbr.rel (%p103) target = $region24
      $region23: #{graph_convolution.2} parent=19 // pred_region
        %s106 = smul.u32 32, %s8
        %p107 = scmp.lt.s32.totalorder %s106, 63
        %s108 = scalar_select %p107, %s106, 63
        %s109 = smul.addr %s108, 2
        %s110 = smul.addr %s109, 4
        %s111 = scalar_lea.vmem %s0, %s110
        %s112 = smul.u32 32, %s8
      $region24: #{graph_convolution.2} parent=19 // pred_fallthru
        _
    $region20: #{graph_convolution.2} parent=5 // pred_fallthru
      _
    %p113 = scmp.le.s32.totalorder 1, %s8
    %p114 = scmp.lt.s32.totalorder %s8, 3
    %p115 = pnand %p113, %p114
    %p116 = pneg %p115
    // Predicated region
    $region25: #{graph_convolution.2} parent=5 // pred_check
      _
    $region26: #{graph_convolution.2} parent=5 // pred_check_branch
      %118 = sbr.rel (%p115) target = $region28
    $region27: #{graph_convolution.2} parent=5 // pred_region
      %s119 = ssub.s32 %s8, 1
      %s120 = smul.u32 32, %s13
      %p121 = scmp.lt.s32.totalorder %s120, 63
      %s122 = scalar_select %p121, %s120, 63
      %s123 = smul.addr %s122, 2
      %s124 = smul.addr %s123, 4
      %s125 = scalar_lea.vmem %s0, %s124
      %p126 = pneg %p34
      %p127 = pneg %p31
      %p128 = pneg %p55
      %p129 = pneg %p52
      %p130 = pneg %p81
      %p131 = pneg %p78
      %s132 = smul.u32 32, %s13
      %p133 = scmp.lt.s32.totalorder %s132, 63
      %s134 = scalar_select %p133, %s132, 63
      %s135 = smul.addr %s134, 4
      %s136 = scalar_lea.vmem %s2, %s135
      %s137 = smul.u32 32, %s13
      %p138 = scmp.lt.s32.totalorder %s137, 63
      %s139 = scalar_select %p138, %s137, 63
      %s140 = smul.addr %s139, 2
      %s141 = smul.addr %s140, 4
      %s142 = scalar_lea.vmem %s0, %s141
      %s143 = smul.u32 32, %s13
      %s144 = smul.u32 32, %s13
      %p145 = scmp.lt.s32.totalorder %s144, 63
      %s146 = scalar_select %p145, %s144, 63
      %s147 = smul.addr %s146, 4
      %s148 = scalar_lea.vmem %s2, %s147
      %s149 = smul.u32 32, %s13
      %v150 = vld [vmem:[%s142] sm:$0xff]
      %v151 = vld [vmem:[%s142 + $0x8] sm:$0xff]
      %v152 = vld [vmem:[%s142 + $0x10] sm:$0xff]
      %v153 = vld [vmem:[%s142 + $0x18] sm:$0xff]
      %v154 = vld [vmem:[%s142 + $0x20] sm:$0xff]
      %v155 = vld [vmem:[%s142 + $0x28] sm:$0xff]
      %v156 = vld [vmem:[%s142 + $0x30] sm:$0xff]
      %v157 = vld [vmem:[%s142 + $0x38] sm:$0xff]
      %v158 = vld [vmem:[%s142 + $0x40] sm:$0xff]
      %v159 = vld [vmem:[%s142 + $0x48] sm:$0xff]
      %v160 = vld [vmem:[%s142 + $0x50] sm:$0xff]
      %v161 = vld [vmem:[%s142 + $0x58] sm:$0xff]
      %v162 = vld [vmem:[%s142 + $0x60] sm:$0xff]
      %v163 = vld [vmem:[%s142 + $0x68] sm:$0xff]
      %v164 = vld [vmem:[%s142 + $0x70] sm:$0xff]
      %v165 = vld [vmem:[%s142 + $0x78] sm:$0xff]
      %v166 = vld [vmem:[%s142 + $0x80] sm:$0xff]
      %v167 = vld [vmem:[%s142 + $0x88] sm:$0xff]
      %v168 = vld [vmem:[%s142 + $0x90] sm:$0xff]
      %v169 = vld [vmem:[%s142 + $0x98] sm:$0xff]
      %v170 = vld [vmem:[%s142 + $0xa0] sm:$0xff]
      %v171 = vld [vmem:[%s142 + $0xa8] sm:$0xff]
      %v172 = vld [vmem:[%s142 + $0xb0] sm:$0xff]
      %v173 = vld [vmem:[%s142 + $0xb8] sm:$0xff]
      %v174 = vld [vmem:[%s142 + $0xc0] sm:$0xff]
      %v175 = vld [vmem:[%s142 + $0xc8] sm:$0xff]
      %v176 = vld [vmem:[%s142 + $0xd0] sm:$0xff]
      %v177 = vld [vmem:[%s142 + $0xd8] sm:$0xff]
      %v178 = vld [vmem:[%s142 + $0xe0] sm:$0xff]
      %v179 = vld [vmem:[%s142 + $0xe8] sm:$0xff]
      %v180 = vld [vmem:[%s142 + $0xf0] sm:$0xff]
      %v181 = vld [vmem:[%s142 + $0xf8] sm:$0xff]
      %v182 = vld [vmem:[%s1] sm:$0xf]
      %v183 = vld [vmem:[%s1 + $0x4] sm:$0xf]
      %v184 = vld [vmem:[%s1 + $0x8] sm:$0xf]
      %v185 = vld [vmem:[%s1 + $0xc] sm:$0xf]
      %v186 = vld [vmem:[%s1 + $0x10] sm:$0xf]
      %v187 = vld [vmem:[%s1 + $0x14] sm:$0xf]
      %v188 = vld [vmem:[%s1 + $0x18] sm:$0xf]
      %v189 = vld [vmem:[%s1 + $0x1c] sm:$0xf]
      %v190 = vld [vmem:[%s1 + $0x20] sm:$0xf]
      %v191 = vld [vmem:[%s1 + $0x24] sm:$0xf]
      %v192 = vld [vmem:[%s1 + $0x28] sm:$0xf]
      %v193 = vld [vmem:[%s1 + $0x2c] sm:$0xf]
      %v194 = vld [vmem:[%s1 + $0x30] sm:$0xf]
      %v195 = vld [vmem:[%s1 + $0x34] sm:$0xf]
      %v196 = vld [vmem:[%s1 + $0x38] sm:$0xf]
      %v197 = vld [vmem:[%s1 + $0x3c] sm:$0xf]
      %v198 = vld [vmem:[%s1 + $0x40] sm:$0xf]
      %v199 = vld [vmem:[%s1 + $0x44] sm:$0xf]
      %v200 = vld [vmem:[%s1 + $0x48] sm:$0xf]
      %v201 = vld [vmem:[%s1 + $0x4c] sm:$0xf]
      %v202 = vld [vmem:[%s1 + $0x50] sm:$0xf]
      %v203 = vld [vmem:[%s1 + $0x54] sm:$0xf]
      %v204 = vld [vmem:[%s1 + $0x58] sm:$0xf]
      %v205 = vld [vmem:[%s1 + $0x5c] sm:$0xf]
      %v206 = vld [vmem:[%s1 + $0x60] sm:$0xf]
      %v207 = vld [vmem:[%s1 + $0x64] sm:$0xf]
      %v208 = vld [vmem:[%s1 + $0x68] sm:$0xf]
      %v209 = vld [vmem:[%s1 + $0x6c] sm:$0xf]
      %v210 = vld [vmem:[%s1 + $0x70] sm:$0xf]
      %v211 = vld [vmem:[%s1 + $0x74] sm:$0xf]
      %v212 = vld [vmem:[%s1 + $0x78] sm:$0xf]
      %v213 = vld [vmem:[%s1 + $0x7c] sm:$0xf]
      %v246 = vunpack.c.l.b16 %v150
      %v247 = vunpack.c.h.b16 %v150
      %v248 = vunpack.c.l.b16 %v151
      %v249 = vunpack.c.h.b16 %v151
      %v250 = vunpack.c.l.b16 %v152
      %v251 = vunpack.c.h.b16 %v152
      %v252 = vunpack.c.l.b16 %v153
      %v253 = vunpack.c.h.b16 %v153
      %v254 = vunpack.c.l.b16 %v154
      %v255 = vunpack.c.h.b16 %v154
      %v256 = vunpack.c.l.b16 %v155
      %v257 = vunpack.c.h.b16 %v155
      %v258 = vunpack.c.l.b16 %v156
      %v259 = vunpack.c.h.b16 %v156
      %v260 = vunpack.c.l.b16 %v157
      %v261 = vunpack.c.h.b16 %v157
      %v262 = vunpack.c.l.b16 %v158
      %v263 = vunpack.c.h.b16 %v158
      %v264 = vunpack.c.l.b16 %v159
      %v265 = vunpack.c.h.b16 %v159
      %v266 = vunpack.c.l.b16 %v160
      %v267 = vunpack.c.h.b16 %v160
      %v268 = vunpack.c.l.b16 %v161
      %v269 = vunpack.c.h.b16 %v161
      %v270 = vunpack.c.l.b16 %v162
      %v271 = vunpack.c.h.b16 %v162
      %v272 = vunpack.c.l.b16 %v163
      %v273 = vunpack.c.h.b16 %v163
      %v274 = vunpack.c.l.b16 %v164
      %v275 = vunpack.c.h.b16 %v164
      %v276 = vunpack.c.l.b16 %v165
      %v277 = vunpack.c.h.b16 %v165
      %v278 = vunpack.c.l.b16 %v166
      %v279 = vunpack.c.h.b16 %v166
      %v280 = vunpack.c.l.b16 %v167
      %v281 = vunpack.c.h.b16 %v167
      %v282 = vunpack.c.l.b16 %v168
      %v283 = vunpack.c.h.b16 %v168
      %v284 = vunpack.c.l.b16 %v169
      %v285 = vunpack.c.h.b16 %v169
      %v286 = vunpack.c.l.b16 %v170
      %v287 = vunpack.c.h.b16 %v170
      %v288 = vunpack.c.l.b16 %v171
      %v289 = vunpack.c.h.b16 %v171
      %v290 = vunpack.c.l.b16 %v172
      %v291 = vunpack.c.h.b16 %v172
      %v292 = vunpack.c.l.b16 %v173
      %v293 = vunpack.c.h.b16 %v173
      %v294 = vunpack.c.l.b16 %v174
      %v295 = vunpack.c.h.b16 %v174
      %v296 = vunpack.c.l.b16 %v175
      %v297 = vunpack.c.h.b16 %v175
      %v298 = vunpack.c.l.b16 %v176
      %v299 = vunpack.c.h.b16 %v176
      %v300 = vunpack.c.l.b16 %v177
      %v301 = vunpack.c.h.b16 %v177
      %v302 = vunpack.c.l.b16 %v178
      %v303 = vunpack.c.h.b16 %v178
      %v304 = vunpack.c.l.b16 %v179
      %v305 = vunpack.c.h.b16 %v179
      %v306 = vunpack.c.l.b16 %v180
      %v307 = vunpack.c.h.b16 %v180
      %v308 = vunpack.c.l.b16 %v181
      %v309 = vunpack.c.h.b16 %v181
      %v310 = vpack.c.b16 %v248, %v246
      %v311 = vpack.c.b16 %v249, %v247
      %v312 = vpack.c.b16 %v252, %v250
      %v313 = vpack.c.b16 %v253, %v251
      %v314 = vpack.c.b16 %v256, %v254
      %v315 = vpack.c.b16 %v257, %v255
      %v316 = vpack.c.b16 %v260, %v258
      %v317 = vpack.c.b16 %v261, %v259
      %v318 = vpack.c.b16 %v264, %v262
      %v319 = vpack.c.b16 %v265, %v263
      %v320 = vpack.c.b16 %v268, %v266
      %v321 = vpack.c.b16 %v269, %v267
      %v322 = vpack.c.b16 %v272, %v270
      %v323 = vpack.c.b16 %v273, %v271
      %v324 = vpack.c.b16 %v276, %v274
      %v325 = vpack.c.b16 %v277, %v275
      %v326 = vpack.c.b16 %v280, %v278
      %v327 = vpack.c.b16 %v281, %v279
      %v328 = vpack.c.b16 %v284, %v282
      %v329 = vpack.c.b16 %v285, %v283
      %v330 = vpack.c.b16 %v288, %v286
      %v331 = vpack.c.b16 %v289, %v287
      %v332 = vpack.c.b16 %v292, %v290
      %v333 = vpack.c.b16 %v293, %v291
      %v334 = vpack.c.b16 %v296, %v294
      %v335 = vpack.c.b16 %v297, %v295
      %v336 = vpack.c.b16 %v300, %v298
      %v337 = vpack.c.b16 %v301, %v299
      %v338 = vpack.c.b16 %v304, %v302
      %v339 = vpack.c.b16 %v305, %v303
      %v340 = vpack.c.b16 %v308, %v306
      %v341 = vpack.c.b16 %v309, %v307
      %v406 = vunpack.c.l.b16 %v182
      %v407 = vunpack.c.l.b16 %v183
      %v408 = vunpack.c.l.b16 %v184
      %v409 = vunpack.c.l.b16 %v185
      %v410 = vunpack.c.l.b16 %v186
      %v411 = vunpack.c.l.b16 %v187
      %v412 = vunpack.c.l.b16 %v188
      %v413 = vunpack.c.l.b16 %v189
      %v414 = vunpack.c.l.b16 %v190
      %v415 = vunpack.c.l.b16 %v191
      %v416 = vunpack.c.l.b16 %v192
      %v417 = vunpack.c.l.b16 %v193
      %v418 = vunpack.c.l.b16 %v194
      %v419 = vunpack.c.l.b16 %v195
      %v420 = vunpack.c.l.b16 %v196
      %v421 = vunpack.c.l.b16 %v197
      %v422 = vunpack.c.l.b16 %v198
      %v423 = vunpack.c.l.b16 %v199
      %v424 = vunpack.c.l.b16 %v200
      %v425 = vunpack.c.l.b16 %v201
      %v426 = vunpack.c.l.b16 %v202
      %v427 = vunpack.c.l.b16 %v203
      %v428 = vunpack.c.l.b16 %v204
      %v429 = vunpack.c.l.b16 %v205
      %v430 = vunpack.c.l.b16 %v206
      %v431 = vunpack.c.l.b16 %v207
      %v432 = vunpack.c.l.b16 %v208
      %v433 = vunpack.c.l.b16 %v209
      %v434 = vunpack.c.l.b16 %v210
      %v435 = vunpack.c.l.b16 %v211
      %v436 = vunpack.c.l.b16 %v212
      %v437 = vunpack.c.l.b16 %v213
      %v438 = vpack.c.b16 %v407, %v406
      %v439 = vpack.c.b16 %v409, %v408
      %v440 = vpack.c.b16 %v411, %v410
      %v441 = vpack.c.b16 %v413, %v412
      %v442 = vpack.c.b16 %v415, %v414
      %v443 = vpack.c.b16 %v417, %v416
      %v444 = vpack.c.b16 %v419, %v418
      %v445 = vpack.c.b16 %v421, %v420
      %v446 = vpack.c.b16 %v423, %v422
      %v447 = vpack.c.b16 %v425, %v424
      %v448 = vpack.c.b16 %v427, %v426
      %v449 = vpack.c.b16 %v429, %v428
      %v450 = vpack.c.b16 %v431, %v430
      %v451 = vpack.c.b16 %v433, %v432
      %v452 = vpack.c.b16 %v435, %v434
      %v453 = vpack.c.b16 %v437, %v436
      %470 = vmatpush.bf16.msra.mxu0 %v445
      %471 = vmatpush.bf16.msra.mxu0 %v444
      %472 = vmatpush.bf16.msra.mxu0 %v443
      %473 = vmatpush.bf16.msra.mxu0 %v442
      %474 = vmatpush.bf16.msra.mxu0 %v441
      %475 = vmatpush.bf16.msra.mxu0 %v440
      %476 = vmatpush.bf16.msra.mxu0 %v439
      %477 = vmatpush.bf16.msra.mxu0 %v438
      %478 = vmatmul.bf16.gmra.mxu0 %v310
      %v479 = vpop.f32.mrf.mxu0
      %v480 = vadd.f32 0.0, %v479
      %v481 = vpop.f32.mrf.mxu0
      %v482 = vadd.f32 0.0, %v481
      %483 = vmatmul.bf16.gmra.mxu0 %v312
      %v484 = vpop.f32.mrf.mxu0
      %v485 = vadd.f32 0.0, %v484
      %v486 = vpop.f32.mrf.mxu0
      %v487 = vadd.f32 0.0, %v486
      %488 = vmatmul.bf16.gmra.mxu0 %v314
      %v489 = vpop.f32.mrf.mxu0
      %v490 = vadd.f32 0.0, %v489
      %v491 = vpop.f32.mrf.mxu0
      %v492 = vadd.f32 0.0, %v491
      %493 = vmatmul.bf16.gmra.mxu0 %v316
      %v494 = vpop.f32.mrf.mxu0
      %v495 = vadd.f32 0.0, %v494
      %v496 = vpop.f32.mrf.mxu0
      %v497 = vadd.f32 0.0, %v496
      %498 = vmatmul.bf16.gmra.mxu0 %v318
      %v499 = vpop.f32.mrf.mxu0
      %v500 = vadd.f32 0.0, %v499
      %v501 = vpop.f32.mrf.mxu0
      %v502 = vadd.f32 0.0, %v501
      %503 = vmatmul.bf16.gmra.mxu0 %v320
      %v504 = vpop.f32.mrf.mxu0
      %v505 = vadd.f32 0.0, %v504
      %v506 = vpop.f32.mrf.mxu0
      %v507 = vadd.f32 0.0, %v506
      %508 = vmatmul.bf16.gmra.mxu0 %v322
      %v509 = vpop.f32.mrf.mxu0
      %v510 = vadd.f32 0.0, %v509
      %v511 = vpop.f32.mrf.mxu0
      %v512 = vadd.f32 0.0, %v511
      %513 = vmatmul.bf16.gmra.mxu0 %v324
      %v514 = vpop.f32.mrf.mxu0
      %v515 = vadd.f32 0.0, %v514
      %v516 = vpop.f32.mrf.mxu0
      %v517 = vadd.f32 0.0, %v516
      %518 = vmatmul.bf16.gmra.mxu0 %v326
      %v519 = vpop.f32.mrf.mxu0
      %v520 = vadd.f32 0.0, %v519
      %v521 = vpop.f32.mrf.mxu0
      %v522 = vadd.f32 0.0, %v521
      %523 = vmatmul.bf16.gmra.mxu0 %v328
      %v524 = vpop.f32.mrf.mxu0
      %v525 = vadd.f32 0.0, %v524
      %v526 = vpop.f32.mrf.mxu0
      %v527 = vadd.f32 0.0, %v526
      %528 = vmatmul.bf16.gmra.mxu0 %v330
      %v529 = vpop.f32.mrf.mxu0
      %v530 = vadd.f32 0.0, %v529
      %v531 = vpop.f32.mrf.mxu0
      %v532 = vadd.f32 0.0, %v531
      %533 = vmatmul.bf16.gmra.mxu0 %v332
      %v534 = vpop.f32.mrf.mxu0
      %v535 = vadd.f32 0.0, %v534
      %v536 = vpop.f32.mrf.mxu0
      %v537 = vadd.f32 0.0, %v536
      %538 = vmatmul.bf16.gmra.mxu0 %v334
      %v539 = vpop.f32.mrf.mxu0
      %v540 = vadd.f32 0.0, %v539
      %v541 = vpop.f32.mrf.mxu0
      %v542 = vadd.f32 0.0, %v541
      %543 = vmatmul.bf16.gmra.mxu0 %v336
      %v544 = vpop.f32.mrf.mxu0
      %v545 = vadd.f32 0.0, %v544
      %v546 = vpop.f32.mrf.mxu0
      %v547 = vadd.f32 0.0, %v546
      %548 = vmatmul.bf16.gmra.mxu0 %v338
      %v549 = vpop.f32.mrf.mxu0
      %v550 = vadd.f32 0.0, %v549
      %v551 = vpop.f32.mrf.mxu0
      %v552 = vadd.f32 0.0, %v551
      %553 = vmatmul.bf16.gmra.mxu0 %v340
      %v554 = vpop.f32.mrf.mxu0
      %v555 = vadd.f32 0.0, %v554
      %v556 = vpop.f32.mrf.mxu0
      %v557 = vadd.f32 0.0, %v556
      %558 = vdwg.mxu0
      %559 = vmatpush.bf16.msra.mxu0 %v453
      %560 = vmatpush.bf16.msra.mxu0 %v452
      %561 = vmatpush.bf16.msra.mxu0 %v451
      %562 = vmatpush.bf16.msra.mxu0 %v450
      %563 = vmatpush.bf16.msra.mxu0 %v449
      %564 = vmatpush.bf16.msra.mxu0 %v448
      %565 = vmatpush.bf16.msra.mxu0 %v447
      %566 = vmatpush.bf16.msra.mxu0 %v446
      %567 = vmatmul.bf16.gmra.mxu0 %v311
      %v568 = vpop.f32.mrf.mxu0
      %v569 = vadd.f32 %v480, %v568
      %v570 = vpop.f32.mrf.mxu0
      %v571 = vadd.f32 %v482, %v570
      %572 = vmatmul.bf16.gmra.mxu0 %v313
      %v573 = vpop.f32.mrf.mxu0
      %v574 = vadd.f32 %v485, %v573
      %v575 = vpop.f32.mrf.mxu0
      %v576 = vadd.f32 %v487, %v575
      %577 = vmatmul.bf16.gmra.mxu0 %v315
      %v578 = vpop.f32.mrf.mxu0
      %v579 = vadd.f32 %v490, %v578
      %v580 = vpop.f32.mrf.mxu0
      %v581 = vadd.f32 %v492, %v580
      %582 = vmatmul.bf16.gmra.mxu0 %v317
      %v583 = vpop.f32.mrf.mxu0
      %v584 = vadd.f32 %v495, %v583
      %v585 = vpop.f32.mrf.mxu0
      %v586 = vadd.f32 %v497, %v585
      %587 = vmatmul.bf16.gmra.mxu0 %v319
      %v588 = vpop.f32.mrf.mxu0
      %v589 = vadd.f32 %v500, %v588
      %v590 = vpop.f32.mrf.mxu0
      %v591 = vadd.f32 %v502, %v590
      %592 = vmatmul.bf16.gmra.mxu0 %v321
      %v593 = vpop.f32.mrf.mxu0
      %v594 = vadd.f32 %v505, %v593
      %v595 = vpop.f32.mrf.mxu0
      %v596 = vadd.f32 %v507, %v595
      %597 = vmatmul.bf16.gmra.mxu0 %v323
      %v598 = vpop.f32.mrf.mxu0
      %v599 = vadd.f32 %v510, %v598
      %v600 = vpop.f32.mrf.mxu0
      %v601 = vadd.f32 %v512, %v600
      %602 = vmatmul.bf16.gmra.mxu0 %v325
      %v603 = vpop.f32.mrf.mxu0
      %v604 = vadd.f32 %v515, %v603
      %v605 = vpop.f32.mrf.mxu0
      %v606 = vadd.f32 %v517, %v605
      %607 = vmatmul.bf16.gmra.mxu0 %v327
      %v608 = vpop.f32.mrf.mxu0
      %v609 = vadd.f32 %v520, %v608
      %v610 = vpop.f32.mrf.mxu0
      %v611 = vadd.f32 %v522, %v610
      %612 = vmatmul.bf16.gmra.mxu0 %v329
      %v613 = vpop.f32.mrf.mxu0
      %v614 = vadd.f32 %v525, %v613
      %v615 = vpop.f32.mrf.mxu0
      %v616 = vadd.f32 %v527, %v615
      %617 = vmatmul.bf16.gmra.mxu0 %v331
      %v618 = vpop.f32.mrf.mxu0
      %v619 = vadd.f32 %v530, %v618
      %v620 = vpop.f32.mrf.mxu0
      %v621 = vadd.f32 %v532, %v620
      %622 = vmatmul.bf16.gmra.mxu0 %v333
      %v623 = vpop.f32.mrf.mxu0
      %v624 = vadd.f32 %v535, %v623
      %v625 = vpop.f32.mrf.mxu0
      %v626 = vadd.f32 %v537, %v625
      %627 = vmatmul.bf16.gmra.mxu0 %v335
      %v628 = vpop.f32.mrf.mxu0
      %v629 = vadd.f32 %v540, %v628
      %v630 = vpop.f32.mrf.mxu0
      %v631 = vadd.f32 %v542, %v630
      %632 = vmatmul.bf16.gmra.mxu0 %v337
      %v633 = vpop.f32.mrf.mxu0
      %v634 = vadd.f32 %v545, %v633
      %v635 = vpop.f32.mrf.mxu0
      %v636 = vadd.f32 %v547, %v635
      %637 = vmatmul.bf16.gmra.mxu0 %v339
      %v638 = vpop.f32.mrf.mxu0
      %v639 = vadd.f32 %v550, %v638
      %v640 = vpop.f32.mrf.mxu0
      %v641 = vadd.f32 %v552, %v640
      %642 = vmatmul.bf16.gmra.mxu0 %v341
      %v643 = vpop.f32.mrf.mxu0
      %v644 = vadd.f32 %v555, %v643
      %v645 = vpop.f32.mrf.mxu0
      %v646 = vadd.f32 %v557, %v645
      %647 = vdwg.mxu0
      %v648 = vpack.c.bf16 %v569, %v569
      %v649 = vpack.c.bf16 %v571, %v571
      %v650 = vpack.c.bf16 %v574, %v574
      %v651 = vpack.c.bf16 %v576, %v576
      %v652 = vpack.c.bf16 %v579, %v579
      %v653 = vpack.c.bf16 %v581, %v581
      %v654 = vpack.c.bf16 %v584, %v584
      %v655 = vpack.c.bf16 %v586, %v586
      %v656 = vpack.c.bf16 %v589, %v589
      %v657 = vpack.c.bf16 %v591, %v591
      %v658 = vpack.c.bf16 %v594, %v594
      %v659 = vpack.c.bf16 %v596, %v596
      %v660 = vpack.c.bf16 %v599, %v599
      %v661 = vpack.c.bf16 %v601, %v601
      %v662 = vpack.c.bf16 %v604, %v604
      %v663 = vpack.c.bf16 %v606, %v606
      %v664 = vpack.c.bf16 %v609, %v609
      %v665 = vpack.c.bf16 %v611, %v611
      %v666 = vpack.c.bf16 %v614, %v614
      %v667 = vpack.c.bf16 %v616, %v616
      %v668 = vpack.c.bf16 %v619, %v619
      %v669 = vpack.c.bf16 %v621, %v621
      %v670 = vpack.c.bf16 %v624, %v624
      %v671 = vpack.c.bf16 %v626, %v626
      %v672 = vpack.c.bf16 %v629, %v629
      %v673 = vpack.c.bf16 %v631, %v631
      %v674 = vpack.c.bf16 %v634, %v634
      %v675 = vpack.c.bf16 %v636, %v636
      %v676 = vpack.c.bf16 %v639, %v639
      %v677 = vpack.c.bf16 %v641, %v641
      %v678 = vpack.c.bf16 %v644, %v644
      %v679 = vpack.c.bf16 %v646, %v646
      %680 = vst [vmem:[%s148] sm:$0xf] %v648
      %681 = vst [vmem:[%s148 + $0x4] sm:$0xf] %v649
      %682 = vst [vmem:[%s148 + $0x8] sm:$0xf] %v650
      %683 = vst [vmem:[%s148 + $0xc] sm:$0xf] %v651
      %684 = vst [vmem:[%s148 + $0x10] sm:$0xf] %v652
      %685 = vst [vmem:[%s148 + $0x14] sm:$0xf] %v653
      %686 = vst [vmem:[%s148 + $0x18] sm:$0xf] %v654
      %687 = vst [vmem:[%s148 + $0x1c] sm:$0xf] %v655
      %688 = vst [vmem:[%s148 + $0x20] sm:$0xf] %v656
      %689 = vst [vmem:[%s148 + $0x24] sm:$0xf] %v657
      %690 = vst [vmem:[%s148 + $0x28] sm:$0xf] %v658
      %691 = vst [vmem:[%s148 + $0x2c] sm:$0xf] %v659
      %692 = vst [vmem:[%s148 + $0x30] sm:$0xf] %v660
      %693 = vst [vmem:[%s148 + $0x34] sm:$0xf] %v661
      %694 = vst [vmem:[%s148 + $0x38] sm:$0xf] %v662
      %695 = vst [vmem:[%s148 + $0x3c] sm:$0xf] %v663
      %696 = vst [vmem:[%s148 + $0x40] sm:$0xf] %v664
      %697 = vst [vmem:[%s148 + $0x44] sm:$0xf] %v665
      %698 = vst [vmem:[%s148 + $0x48] sm:$0xf] %v666
      %699 = vst [vmem:[%s148 + $0x4c] sm:$0xf] %v667
      %700 = vst [vmem:[%s148 + $0x50] sm:$0xf] %v668
      %701 = vst [vmem:[%s148 + $0x54] sm:$0xf] %v669
      %702 = vst [vmem:[%s148 + $0x58] sm:$0xf] %v670
      %703 = vst [vmem:[%s148 + $0x5c] sm:$0xf] %v671
      %704 = vst [vmem:[%s148 + $0x60] sm:$0xf] %v672
      %705 = vst [vmem:[%s148 + $0x64] sm:$0xf] %v673
      %706 = vst [vmem:[%s148 + $0x68] sm:$0xf] %v674
      %707 = vst [vmem:[%s148 + $0x6c] sm:$0xf] %v675
      %708 = vst [vmem:[%s148 + $0x70] sm:$0xf] %v676
      %709 = vst [vmem:[%s148 + $0x74] sm:$0xf] %v677
      %710 = vst [vmem:[%s148 + $0x78] sm:$0xf] %v678
      %711 = vst [vmem:[%s148 + $0x7c] sm:$0xf] %v679
      %s712 = smul.u32 32, %s13
      %p713 = scmp.lt.s32.totalorder %s712, 63
      %s714 = scalar_select %p713, %s712, 63
      %s715 = smul.addr %s714, 4
      %s716 = scalar_lea.vmem %s2, %s715
      // Predicated region
      $region29: #{graph_convolution.2} parent=27 // pred_check
        %p717 = pneg %p78
      $region30: #{graph_convolution.2} parent=27 // pred_check_branch
        %719 = sbr.rel (%p717) target = $region32
      $region31: #{graph_convolution.2} parent=27 // pred_region
        %s720 = smul.u32 32, %s13
      $region32: #{graph_convolution.2} parent=27 // pred_fallthru
        _
    $region28: #{graph_convolution.2} parent=5 // pred_fallthru
      _
    %p721 = scmp.le.s32.totalorder 2, %s8
    // Predicated region
    $region33: #{graph_convolution.2} parent=5 // pred_check
      %p722 = pneg %p721
    $region34: #{graph_convolution.2} parent=5 // pred_check_branch
      %724 = sbr.rel (%p722) target = $region36
    $region35: #{graph_convolution.2} parent=5 // pred_region
      %s725 = ssub.s32 %s8, 2
      // Predicated region
      $region37: #{graph_convolution.2} parent=35 // pred_check
        %p726 = pneg %p84
      $region38: #{graph_convolution.2} parent=35 // pred_check_branch
        %728 = sbr.rel (%p726) target = $region40
      $region39: #{graph_convolution.2} parent=35 // pred_region
        %s729 = smul.u32 32, %s14
        %p730 = scmp.lt.s32.totalorder %s729, 63
        %s731 = scalar_select %p730, %s729, 63
        %s732 = smul.addr %s731, 4
        %s733 = scalar_lea.vmem %s2, %s732
      $region40: #{graph_convolution.2} parent=35 // pred_fallthru
        _
    $region36: #{graph_convolution.2} parent=5 // pred_fallthru
      _
  $region6: #{graph_convolution.2} parent=0 // loop_footer
    %s12 = sadd.s32 1, %s8
  $region7: #{graph_convolution.2} parent=0 // loop_footer_branch
    %7 = sbr.rel target = $region3
  $region8: #{graph_convolution.2} parent=0 // loop_exit
    _

// kernel: graph_convolution.3
$region0: #{graph_convolution.3}
  #allocation0 [shape = 'u32[]', space=smem, size = 0x4, offset = 0x4, fixed_abs, tag = 'smem constant byte address 0x4 - core index']
  #allocation1 [shape = 'u32[72,128]{1,0:T(1,128)}', space=vmem, size = 0x9000, scoped, tag = 'internal scratch']
  #allocation2 [shape = 'f32[256,128]{1,0:T(8,128)}', space=vmem, size = 0x20000, scoped, tag = 'scratch operand']
  %s0 = inlined_call_operand.vmem [shape: bf16[512,512], index: 0, kind: input, shape index: {}]
  %s1 = inlined_call_operand.vmem [shape: bf16[512,128], index: 1, kind: input, shape index: {}]
  %s2 = inlined_call_operand.vmem [shape: f32[1,128], index: 2, kind: input, shape index: {}]
  %s3 = inlined_call_operand.vmem [shape: f32[512,128], index: 3, kind: output, shape index: {}]
  %s4 = sld [smem:[#allocation0]]
  $region53: #{graph_convolution.3} parent=0
    _
  %s6 = ssub.s32 1, %s4
  %s7 = scalar_select 0, %s6, %s4
  loop: start=0, step=1, limit=4
  $region2: #{graph_convolution.3} parent=0 // loop_pre_header
    _
  $region3: #{graph_convolution.3} parent=0 // loop_header
    %s9 = sphi 0, %s13
    %p10 = scmp.ge.s32.totalorder %s9, 4
    %s16 = sphi 0, %s28
    %s17 = sphi 0, %s24
    %s18 = sphi 0, %s16
    %s19 = sphi 0, %s17
    %s20 = sphi 0, %s18
    %s21 = sphi 0, %s19
    %s33 = sphi 0, %s35
    %s36 = sphi 0, %s33
    %s37 = sphi 0, %s36
    %s53 = sphi 0, %s37
    %s57 = sphi 0, %s57
    %s59 = sphi 0, %s57
    %s60 = sphi 0, %s59
    %s74 = sphi 0, %s60
    %s78 = sphi 0, %s78
    %s80 = sphi 0, %s78
    %s81 = sphi 0, %s80
    %s95 = sphi 0, %s81
    %s101 = sphi 0, %s103
    %s104 = sphi 0, %s101
    %s105 = sphi 0, %s104
    %s121 = sphi 0, %s105
  $region4: #{graph_convolution.3} parent=0 // loop_header_branch
    %12 = sbr.rel (%p10) target = $region8
  $region5: #{graph_convolution.3} parent=0 // loop_body
    %s14 = ssub.s32 %s9, 1
    %s15 = ssub.s32 %s9, 2
    %s22 = sadd.s32 1, %s17
    %p23 = scmp.ge.s32.totalorder %s22, 1
    %s24 = scalar_select %p23, 0, %s22
    %s25 = sadd.s32 1, %s16
    %s26 = scalar_select %p23, %s25, %s16
    %p27 = scmp.ge.s32.totalorder %s26, 2
    %s28 = scalar_select %p27, 0, %s26
    %s29 = ssub.s32 %s16, %s28
    %s30 = ssub.s32 %s17, %s24
    %s31 = sor.u32 %s29, %s30
    %p32 = scmp.eq.s32.totalorder %s31, 0
    %s34 = sadd.s32 %s33, 1
    %s35 = scalar_select %p32, %s33, %s34
    %p38 = pneg %p32
    %p39 = scmp.eq.s32.totalorder %s9, 1
    %p40 = por %p38, %p39
    %p41 = scmp.ne.s32.totalorder %s33, %s36
    %p42 = scmp.eq.s32.totalorder %s9, 0
    %p43 = por %p41, %p42
    %p44 = scmp.ne.s32.totalorder %s33, %s36
    %p45 = scmp.eq.s32.totalorder %s14, 1
    %p46 = por %p44, %p45
    %p47 = scmp.ne.s32.totalorder %s36, %s37
    %p48 = scmp.eq.s32.totalorder %s14, 0
    %p49 = por %p47, %p48
    %p50 = scmp.ne.s32.totalorder %s36, %s37
    %p51 = scmp.eq.s32.totalorder %s15, 1
    %p52 = por %p50, %p51
    %p54 = scmp.ne.s32.totalorder %s37, %s53
    %p55 = scmp.eq.s32.totalorder %s15, 0
    %p56 = por %p54, %p55
    %s58 = sadd.s32 %s57, 1
    %p61 = scmp.eq.s32.totalorder %s9, 1
    %p62 = scmp.ne.s32.totalorder %s57, %s59
    %p63 = scmp.eq.s32.totalorder %s9, 0
    %p64 = por %p62, %p63
    %p65 = scmp.ne.s32.totalorder %s57, %s59
    %p66 = scmp.eq.s32.totalorder %s14, 1
    %p67 = por %p65, %p66
    %p68 = scmp.ne.s32.totalorder %s59, %s60
    %p69 = scmp.eq.s32.totalorder %s14, 0
    %p70 = por %p68, %p69
    %p71 = scmp.ne.s32.totalorder %s59, %s60
    %p72 = scmp.eq.s32.totalorder %s15, 1
    %p73 = por %p71, %p72
    %p75 = scmp.ne.s32.totalorder %s60, %s74
    %p76 = scmp.eq.s32.totalorder %s15, 0
    %p77 = por %p75, %p76
    %s79 = sadd.s32 %s78, 1
    %p82 = scmp.eq.s32.totalorder %s9, 1
    %p83 = scmp.ne.s32.totalorder %s78, %s80
    %p84 = scmp.eq.s32.totalorder %s9, 0
    %p85 = por %p83, %p84
    %p86 = scmp.ne.s32.totalorder %s78, %s80
    %p87 = scmp.eq.s32.totalorder %s14, 1
    %p88 = por %p86, %p87
    %p89 = scmp.ne.s32.totalorder %s80, %s81
    %p90 = scmp.eq.s32.totalorder %s14, 0
    %p91 = por %p89, %p90
    %p92 = scmp.ne.s32.totalorder %s80, %s81
    %p93 = scmp.eq.s32.totalorder %s15, 1
    %p94 = por %p92, %p93
    %p96 = scmp.ne.s32.totalorder %s81, %s95
    %p97 = scmp.eq.s32.totalorder %s15, 0
    %p98 = por %p96, %p97
    %s99 = ssub.s32 %s16, %s28
    %p100 = scmp.eq.s32.totalorder %s99, 0
    %s102 = sadd.s32 %s101, 1
    %s103 = scalar_select %p100, %s101, %s102
    %p106 = pneg %p100
    %p107 = scmp.eq.s32.totalorder %s9, 1
    %p108 = por %p106, %p107
    %p109 = scmp.ne.s32.totalorder %s101, %s104
    %p110 = scmp.eq.s32.totalorder %s9, 0
    %p111 = por %p109, %p110
    %p112 = scmp.ne.s32.totalorder %s101, %s104
    %p113 = scmp.eq.s32.totalorder %s14, 1
    %p114 = por %p112, %p113
    %p115 = scmp.ne.s32.totalorder %s104, %s105
    %p116 = scmp.eq.s32.totalorder %s14, 0
    %p117 = por %p115, %p116
    %p118 = scmp.ne.s32.totalorder %s104, %s105
    %p119 = scmp.eq.s32.totalorder %s15, 1
    %p120 = por %p118, %p119
    %p122 = scmp.ne.s32.totalorder %s105, %s121
    %p123 = scmp.eq.s32.totalorder %s15, 0
    %p124 = por %p122, %p123
    %p125 = scmp.le.s32.totalorder 1, %s9
    %p126 = scmp.lt.s32.totalorder %s9, 3
    %p127 = pnand %p125, %p126
    %p128 = pneg %p127
    // Predicated region
    $region9: #{graph_convolution.3} parent=5 // pred_check
      _
    $region10: #{graph_convolution.3} parent=5 // pred_check_branch
      %130 = sbr.rel (%p127) target = $region12
    $region11: #{graph_convolution.3} parent=5 // pred_region
      %s131 = ssub.s32 %s9, 1
      // Predicated region
      $region13: #{graph_convolution.3} parent=11 // pred_check
        %p132 = pneg %p70
      $region14: #{graph_convolution.3} parent=11 // pred_check_branch
        %134 = sbr.rel (%p132) target = $region16
      $region15: #{graph_convolution.3} parent=11 // pred_region
        _
      $region16: #{graph_convolution.3} parent=11 // pred_fallthru
        _
      // Predicated region
      $region17: #{graph_convolution.3} parent=11 // pred_check
        %p135 = pneg %p91
      $region18: #{graph_convolution.3} parent=11 // pred_check_branch
        %137 = sbr.rel (%p135) target = $region20
      $region19: #{graph_convolution.3} parent=11 // pred_region
        _
      $region20: #{graph_convolution.3} parent=11 // pred_fallthru
        _
    $region12: #{graph_convolution.3} parent=5 // pred_fallthru
      _
    %p138 = scmp.lt.s32.totalorder %s9, 2
    // Predicated region
    $region21: #{graph_convolution.3} parent=5 // pred_check
      %p139 = pneg %p138
    $region22: #{graph_convolution.3} parent=5 // pred_check_branch
      %141 = sbr.rel (%p139) target = $region24
    $region23: #{graph_convolution.3} parent=5 // pred_region
      // Predicated region
      $region25: #{graph_convolution.3} parent=23 // pred_check
        %p142 = pneg %p43
      $region26: #{graph_convolution.3} parent=23 // pred_check_branch
        %144 = sbr.rel (%p142) target = $region28
      $region27: #{graph_convolution.3} parent=23 // pred_region
        %s145 = smul.u32 32, %s16
        %s146 = smul.u32 4, %s17
        %p147 = scmp.lt.s32.totalorder %s145, 63
        %s148 = scalar_select %p147, %s145, 63
        %p149 = scmp.lt.s32.totalorder %s146, 3
        %s150 = scalar_select %p149, %s146, 3
        %s151 = smul.addr %s148, 4
        %s152 = sadd.s32 %s150, %s151
        %s153 = smul.addr %s152, 4
        %s154 = scalar_lea.vmem %s0, %s153
        %s155 = smul.u32 32, %s16
        %s156 = smul.u32 4, %s17
      $region28: #{graph_convolution.3} parent=23 // pred_fallthru
        _
    $region24: #{graph_convolution.3} parent=5 // pred_fallthru
      _
    %p157 = scmp.le.s32.totalorder 1, %s9
    %p158 = scmp.lt.s32.totalorder %s9, 3
    %p159 = pnand %p157, %p158
    %p160 = pneg %p159
    // Predicated region
    $region29: #{graph_convolution.3} parent=5 // pred_check
      _
    $region30: #{graph_convolution.3} parent=5 // pred_check_branch
      %162 = sbr.rel (%p159) target = $region32
    $region31: #{graph_convolution.3} parent=5 // pred_region
      %s163 = ssub.s32 %s9, 1
      %s164 = smul.u32 32, %s18
      %s165 = smul.u32 4, %s19
      %p166 = scmp.lt.s32.totalorder %s164, 63
      %s167 = scalar_select %p166, %s164, 63
      %p168 = scmp.lt.s32.totalorder %s165, 3
      %s169 = scalar_select %p168, %s165, 3
      %s170 = smul.addr %s167, 4
      %s171 = sadd.s32 %s169, %s170
      %s172 = smul.addr %s171, 4
      %s173 = scalar_lea.vmem %s0, %s172
      %p174 = pneg %p49
      %p175 = pneg %p46
      %p176 = pneg %p70
      %p177 = pneg %p67
      %p178 = pneg %p91
      %p179 = pneg %p88
      %p180 = pneg %p117
      %p181 = pneg %p114
      %s182 = smul.u32 32, %s18
      %p183 = scmp.lt.s32.totalorder %s182, 63
      %s184 = scalar_select %p183, %s182, 63
      %s185 = smul.addr %s184, 8
      %s186 = scalar_lea.vmem %s3, %s185
      %s187 = smul.u32 32, %s18
      %s188 = smul.u32 4, %s19
      %p189 = scmp.lt.s32.totalorder %s187, 63
      %s190 = scalar_select %p189, %s187, 63
      %p191 = scmp.lt.s32.totalorder %s188, 3
      %s192 = scalar_select %p191, %s188, 3
      %s193 = smul.addr %s190, 4
      %s194 = sadd.s32 %s192, %s193
      %s195 = smul.addr %s194, 4
      %s196 = scalar_lea.vmem %s0, %s195
      %s197 = smul.u32 32, %s18
      %s198 = smul.u32 4, %s19
      %s199 = smul.u32 32, %s18
      %p200 = scmp.lt.s32.totalorder %s199, 63
      %s201 = scalar_select %p200, %s199, 63
      %s202 = smul.addr %s201, 8
      %s203 = scalar_lea.vmem %s3, %s202
      %s204 = smul.u32 32, %s18
      %p205 = scmp.eq.s32.totalorder %s19, 0
      // Predicated region
      $region33: #{graph_convolution.3} parent=31 // pred_check
        %p206 = pneg %p205
      $region34: #{graph_convolution.3} parent=31 // pred_check_branch
        %208 = sbr.rel (%p206) target = $region36
      $region35: #{graph_convolution.3} parent=31 // pred_region
        %v209 = vld [vmem:[%s2] sm:$0x1]
        %v211 = vperm.slane %v209, 0
        %213 = vst [vmem:[#allocation2] sm:$0xff] %v211
        %214 = vst [vmem:[#allocation2 + $0x8] sm:$0xff] %v211
        %215 = vst [vmem:[#allocation2 + $0x10] sm:$0xff] %v211
        %216 = vst [vmem:[#allocation2 + $0x18] sm:$0xff] %v211
        %217 = vst [vmem:[#allocation2 + $0x20] sm:$0xff] %v211
        %218 = vst [vmem:[#allocation2 + $0x28] sm:$0xff] %v211
        %219 = vst [vmem:[#allocation2 + $0x30] sm:$0xff] %v211
        %220 = vst [vmem:[#allocation2 + $0x38] sm:$0xff] %v211
        %221 = vst [vmem:[#allocation2 + $0x40] sm:$0xff] %v211
        %222 = vst [vmem:[#allocation2 + $0x48] sm:$0xff] %v211
        %223 = vst [vmem:[#allocation2 + $0x50] sm:$0xff] %v211
        %224 = vst [vmem:[#allocation2 + $0x58] sm:$0xff] %v211
        %225 = vst [vmem:[#allocation2 + $0x60] sm:$0xff] %v211
        %226 = vst [vmem:[#allocation2 + $0x68] sm:$0xff] %v211
        %227 = vst [vmem:[#allocation2 + $0x70] sm:$0xff] %v211
        %228 = vst [vmem:[#allocation2 + $0x78] sm:$0xff] %v211
        %229 = vst [vmem:[#allocation2 + $0x80] sm:$0xff] %v211
        %230 = vst [vmem:[#allocation2 + $0x88] sm:$0xff] %v211
        %231 = vst [vmem:[#allocation2 + $0x90] sm:$0xff] %v211
        %232 = vst [vmem:[#allocation2 + $0x98] sm:$0xff] %v211
        %233 = vst [vmem:[#allocation2 + $0xa0] sm:$0xff] %v211
        %234 = vst [vmem:[#allocation2 + $0xa8] sm:$0xff] %v211
        %235 = vst [vmem:[#allocation2 + $0xb0] sm:$0xff] %v211
        %236 = vst [vmem:[#allocation2 + $0xb8] sm:$0xff] %v211
        %237 = vst [vmem:[#allocation2 + $0xc0] sm:$0xff] %v211
        %238 = vst [vmem:[#allocation2 + $0xc8] sm:$0xff] %v211
        %239 = vst [vmem:[#allocation2 + $0xd0] sm:$0xff] %v211
        %240 = vst [vmem:[#allocation2 + $0xd8] sm:$0xff] %v211
        %241 = vst [vmem:[#allocation2 + $0xe0] sm:$0xff] %v211
        %242 = vst [vmem:[#allocation2 + $0xe8] sm:$0xff] %v211
        %243 = vst [vmem:[#allocation2 + $0xf0] sm:$0xff] %v211
        %244 = vst [vmem:[#allocation2 + $0xf8] sm:$0xff] %v211
      $region36: #{graph_convolution.3} parent=31 // pred_fallthru
        _
      %s245 = smul.u32 %s19, 512
      %s246 = sshra.s32 %s245, 3
      %s247 = sand.u32 %s245, 7
      %s248 = smul.addr %s246, 4
      %s249 = scalar_lea.vmem %s1, %s248
      %v250 = vld [vmem:[%s249] sm:$0xf]
      %v251 = vld [vmem:[%s249 + $0x4] sm:$0xf]
      %v252 = vld [vmem:[%s249 + $0x8] sm:$0xf]
      %v253 = vld [vmem:[%s249 + $0xc] sm:$0xf]
      %v254 = vld [vmem:[%s249 + $0x10] sm:$0xf]
      %v255 = vld [vmem:[%s249 + $0x14] sm:$0xf]
      %v256 = vld [vmem:[%s249 + $0x18] sm:$0xf]
      %v257 = vld [vmem:[%s249 + $0x1c] sm:$0xf]
      %v258 = vld [vmem:[%s249 + $0x20] sm:$0xf]
      %v259 = vld [vmem:[%s249 + $0x24] sm:$0xf]
      %v260 = vld [vmem:[%s249 + $0x28] sm:$0xf]
      %v261 = vld [vmem:[%s249 + $0x2c] sm:$0xf]
      %v262 = vld [vmem:[%s249 + $0x30] sm:$0xf]
      %v263 = vld [vmem:[%s249 + $0x34] sm:$0xf]
      %v264 = vld [vmem:[%s249 + $0x38] sm:$0xf]
      %v265 = vld [vmem:[%s249 + $0x3c] sm:$0xf]
      %v266 = vld [vmem:[%s249 + $0x40] sm:$0xf]
      %v267 = vld [vmem:[%s249 + $0x44] sm:$0xf]
      %v268 = vld [vmem:[%s249 + $0x48] sm:$0xf]
      %v269 = vld [vmem:[%s249 + $0x4c] sm:$0xf]
      %v270 = vld [vmem:[%s249 + $0x50] sm:$0xf]
      %v271 = vld [vmem:[%s249 + $0x54] sm:$0xf]
      %v272 = vld [vmem:[%s249 + $0x58] sm:$0xf]
      %v273 = vld [vmem:[%s249 + $0x5c] sm:$0xf]
      %v274 = vld [vmem:[%s249 + $0x60] sm:$0xf]
      %v275 = vld [vmem:[%s249 + $0x64] sm:$0xf]
      %v276 = vld [vmem:[%s249 + $0x68] sm:$0xf]
      %v277 = vld [vmem:[%s249 + $0x6c] sm:$0xf]
      %v278 = vld [vmem:[%s249 + $0x70] sm:$0xf]
      %v279 = vld [vmem:[%s249 + $0x74] sm:$0xf]
      %v280 = vld [vmem:[%s249 + $0x78] sm:$0xf]
      %v281 = vld [vmem:[%s249 + $0x7c] sm:$0xf]
      %v282 = vld [vmem:[%s249 + $0x80] sm:$0xf]
      %v283 = vld [vmem:[%s249 + $0x84] sm:$0xf]
      %v284 = vld [vmem:[%s249 + $0x88] sm:$0xf]
      %v285 = vld [vmem:[%s249 + $0x8c] sm:$0xf]
      %v286 = vld [vmem:[%s249 + $0x90] sm:$0xf]
      %v287 = vld [vmem:[%s249 + $0x94] sm:$0xf]
      %v288 = vld [vmem:[%s249 + $0x98] sm:$0xf]
      %v289 = vld [vmem:[%s249 + $0x9c] sm:$0xf]
      %v290 = vld [vmem:[%s249 + $0xa0] sm:$0xf]
      %v291 = vld [vmem:[%s249 + $0xa4] sm:$0xf]
      %v292 = vld [vmem:[%s249 + $0xa8] sm:$0xf]
      %v293 = vld [vmem:[%s249 + $0xac] sm:$0xf]
      %v294 = vld [vmem:[%s249 + $0xb0] sm:$0xf]
      %v295 = vld [vmem:[%s249 + $0xb4] sm:$0xf]
      %v296 = vld [vmem:[%s249 + $0xb8] sm:$0xf]
      %v297 = vld [vmem:[%s249 + $0xbc] sm:$0xf]
      %v298 = vld [vmem:[%s249 + $0xc0] sm:$0xf]
      %v299 = vld [vmem:[%s249 + $0xc4] sm:$0xf]
      %v300 = vld [vmem:[%s249 + $0xc8] sm:$0xf]
      %v301 = vld [vmem:[%s249 + $0xcc] sm:$0xf]
      %v302 = vld [vmem:[%s249 + $0xd0] sm:$0xf]
      %v303 = vld [vmem:[%s249 + $0xd4] sm:$0xf]
      %v304 = vld [vmem:[%s249 + $0xd8] sm:$0xf]
      %v305 = vld [vmem:[%s249 + $0xdc] sm:$0xf]
      %v306 = vld [vmem:[%s249 + $0xe0] sm:$0xf]
      %v307 = vld [vmem:[%s249 + $0xe4] sm:$0xf]
      %v308 = vld [vmem:[%s249 + $0xe8] sm:$0xf]
      %v309 = vld [vmem:[%s249 + $0xec] sm:$0xf]
      %v310 = vld [vmem:[%s249 + $0xf0] sm:$0xf]
      %v311 = vld [vmem:[%s249 + $0xf4] sm:$0xf]
      %v312 = vld [vmem:[%s249 + $0xf8] sm:$0xf]
      %v313 = vld [vmem:[%s249 + $0xfc] sm:$0xf]
      %v314 = vld [vmem:[#allocation2] sm:$0xff]
      %v315 = vld [vmem:[#allocation2 + $0x8] sm:$0xff]
      %v316 = vld [vmem:[#allocation2 + $0x10] sm:$0xff]
      %v317 = vld [vmem:[#allocation2 + $0x18] sm:$0xff]
      %v318 = vld [vmem:[#allocation2 + $0x20] sm:$0xff]
      %v319 = vld [vmem:[#allocation2 + $0x28] sm:$0xff]
      %v320 = vld [vmem:[#allocation2 + $0x30] sm:$0xff]
      %v321 = vld [vmem:[#allocation2 + $0x38] sm:$0xff]
      %v322 = vld [vmem:[#allocation2 + $0x40] sm:$0xff]
      %v323 = vld [vmem:[#allocation2 + $0x48] sm:$0xff]
      %v324 = vld [vmem:[#allocation2 + $0x50] sm:$0xff]
      %v325 = vld [vmem:[#allocation2 + $0x58] sm:$0xff]
      %v326 = vld [vmem:[#allocation2 + $0x60] sm:$0xff]
      %v327 = vld [vmem:[#allocation2 + $0x68] sm:$0xff]
      %v328 = vld [vmem:[#allocation2 + $0x70] sm:$0xff]
      %v329 = vld [vmem:[#allocation2 + $0x78] sm:$0xff]
      %v330 = vld [vmem:[#allocation2 + $0x80] sm:$0xff]
      %v331 = vld [vmem:[#allocation2 + $0x88] sm:$0xff]
      %v332 = vld [vmem:[#allocation2 + $0x90] sm:$0xff]
      %v333 = vld [vmem:[#allocation2 + $0x98] sm:$0xff]
      %v334 = vld [vmem:[#allocation2 + $0xa0] sm:$0xff]
      %v335 = vld [vmem:[#allocation2 + $0xa8] sm:$0xff]
      %v336 = vld [vmem:[#allocation2 + $0xb0] sm:$0xff]
      %v337 = vld [vmem:[#allocation2 + $0xb8] sm:$0xff]
      %v338 = vld [vmem:[#allocation2 + $0xc0] sm:$0xff]
      %v339 = vld [vmem:[#allocation2 + $0xc8] sm:$0xff]
      %v340 = vld [vmem:[#allocation2 + $0xd0] sm:$0xff]
      %v341 = vld [vmem:[#allocation2 + $0xd8] sm:$0xff]
      %v342 = vld [vmem:[#allocation2 + $0xe0] sm:$0xff]
      %v343 = vld [vmem:[#allocation2 + $0xe8] sm:$0xff]
      %v344 = vld [vmem:[#allocation2 + $0xf0] sm:$0xff]
      %v345 = vld [vmem:[#allocation2 + $0xf8] sm:$0xff]
      %v346 = vld [vmem:[%s196] sm:$0xff]
      %v347 = vld [vmem:[%s196 + $0x8] sm:$0xff]
      %v348 = vld [vmem:[%s196 + $0x10] sm:$0xff]
      %v349 = vld [vmem:[%s196 + $0x18] sm:$0xff]
      %v350 = vld [vmem:[%s196 + $0x20] sm:$0xff]
      %v351 = vld [vmem:[%s196 + $0x28] sm:$0xff]
      %v352 = vld [vmem:[%s196 + $0x30] sm:$0xff]
      %v353 = vld [vmem:[%s196 + $0x38] sm:$0xff]
      %v354 = vld [vmem:[%s196 + $0x40] sm:$0xff]
      %v355 = vld [vmem:[%s196 + $0x48] sm:$0xff]
      %v356 = vld [vmem:[%s196 + $0x50] sm:$0xff]
      %v357 = vld [vmem:[%s196 + $0x58] sm:$0xff]
      %v358 = vld [vmem:[%s196 + $0x60] sm:$0xff]
      %v359 = vld [vmem:[%s196 + $0x68] sm:$0xff]
      %v360 = vld [vmem:[%s196 + $0x70] sm:$0xff]
      %v361 = vld [vmem:[%s196 + $0x78] sm:$0xff]
      %v362 = vld [vmem:[%s196 + $0x80] sm:$0xff]
      %v363 = vld [vmem:[%s196 + $0x88] sm:$0xff]
      %v364 = vld [vmem:[%s196 + $0x90] sm:$0xff]
      %v365 = vld [vmem:[%s196 + $0x98] sm:$0xff]
      %v366 = vld [vmem:[%s196 + $0xa0] sm:$0xff]
      %v367 = vld [vmem:[%s196 + $0xa8] sm:$0xff]
      %v368 = vld [vmem:[%s196 + $0xb0] sm:$0xff]
      %v369 = vld [vmem:[%s196 + $0xb8] sm:$0xff]
      %v370 = vld [vmem:[%s196 + $0xc0] sm:$0xff]
      %v371 = vld [vmem:[%s196 + $0xc8] sm:$0xff]
      %v372 = vld [vmem:[%s196 + $0xd0] sm:$0xff]
      %v373 = vld [vmem:[%s196 + $0xd8] sm:$0xff]
      %v374 = vld [vmem:[%s196 + $0xe0] sm:$0xff]
      %v375 = vld [vmem:[%s196 + $0xe8] sm:$0xff]
      %v376 = vld [vmem:[%s196 + $0xf0] sm:$0xff]
      %v377 = vld [vmem:[%s196 + $0xf8] sm:$0xff]
      %v378 = vld [vmem:[%s196 + $0x100] sm:$0xff]
      %v379 = vld [vmem:[%s196 + $0x108] sm:$0xff]
      %v380 = vld [vmem:[%s196 + $0x110] sm:$0xff]
      %v381 = vld [vmem:[%s196 + $0x118] sm:$0xff]
      %v382 = vld [vmem:[%s196 + $0x120] sm:$0xff]
      %v383 = vld [vmem:[%s196 + $0x128] sm:$0xff]
      %v384 = vld [vmem:[%s196 + $0x130] sm:$0xff]
      %v385 = vld [vmem:[%s196 + $0x138] sm:$0xff]
      %v386 = vld [vmem:[%s196 + $0x140] sm:$0xff]
      %v387 = vld [vmem:[%s196 + $0x148] sm:$0xff]
      %v388 = vld [vmem:[%s196 + $0x150] sm:$0xff]
      %v389 = vld [vmem:[%s196 + $0x158] sm:$0xff]
      %v390 = vld [vmem:[%s196 + $0x160] sm:$0xff]
      %v391 = vld [vmem:[%s196 + $0x168] sm:$0xff]
      %v392 = vld [vmem:[%s196 + $0x170] sm:$0xff]
      %v393 = vld [vmem:[%s196 + $0x178] sm:$0xff]
      %v394 = vld [vmem:[%s196 + $0x180] sm:$0xff]
      %v395 = vld [vmem:[%s196 + $0x188] sm:$0xff]
      %v396 = vld [vmem:[%s196 + $0x190] sm:$0xff]
      %v397 = vld [vmem:[%s196 + $0x198] sm:$0xff]
      %v398 = vld [vmem:[%s196 + $0x1a0] sm:$0xff]
      %v399 = vld [vmem:[%s196 + $0x1a8] sm:$0xff]
      %v400 = vld [vmem:[%s196 + $0x1b0] sm:$0xff]
      %v401 = vld [vmem:[%s196 + $0x1b8] sm:$0xff]
      %v402 = vld [vmem:[%s196 + $0x1c0] sm:$0xff]
      %v403 = vld [vmem:[%s196 + $0x1c8] sm:$0xff]
      %v404 = vld [vmem:[%s196 + $0x1d0] sm:$0xff]
      %v405 = vld [vmem:[%s196 + $0x1d8] sm:$0xff]
      %v406 = vld [vmem:[%s196 + $0x1e0] sm:$0xff]
      %v407 = vld [vmem:[%s196 + $0x1e8] sm:$0xff]
      %v408 = vld [vmem:[%s196 + $0x1f0] sm:$0xff]
      %v409 = vld [vmem:[%s196 + $0x1f8] sm:$0xff]
      %v474 = vunpack.c.l.b16 %v346
      %v475 = vunpack.c.h.b16 %v346
      %v476 = vunpack.c.l.b16 %v347
      %v477 = vunpack.c.h.b16 %v347
      %v478 = vunpack.c.l.b16 %v348
      %v479 = vunpack.c.h.b16 %v348
      %v480 = vunpack.c.l.b16 %v349
      %v481 = vunpack.c.h.b16 %v349
      %v482 = vunpack.c.l.b16 %v350
      %v483 = vunpack.c.h.b16 %v350
      %v484 = vunpack.c.l.b16 %v351
      %v485 = vunpack.c.h.b16 %v351
      %v486 = vunpack.c.l.b16 %v352
      %v487 = vunpack.c.h.b16 %v352
      %v488 = vunpack.c.l.b16 %v353
      %v489 = vunpack.c.h.b16 %v353
      %v490 = vunpack.c.l.b16 %v354
      %v491 = vunpack.c.h.b16 %v354
      %v492 = vunpack.c.l.b16 %v355
      %v493 = vunpack.c.h.b16 %v355
      %v494 = vunpack.c.l.b16 %v356
      %v495 = vunpack.c.h.b16 %v356
      %v496 = vunpack.c.l.b16 %v357
      %v497 = vunpack.c.h.b16 %v357
      %v498 = vunpack.c.l.b16 %v358
      %v499 = vunpack.c.h.b16 %v358
      %v500 = vunpack.c.l.b16 %v359
      %v501 = vunpack.c.h.b16 %v359
      %v502 = vunpack.c.l.b16 %v360
      %v503 = vunpack.c.h.b16 %v360
      %v504 = vunpack.c.l.b16 %v361
      %v505 = vunpack.c.h.b16 %v361
      %v506 = vunpack.c.l.b16 %v362
      %v507 = vunpack.c.h.b16 %v362
      %v508 = vunpack.c.l.b16 %v363
      %v509 = vunpack.c.h.b16 %v363
      %v510 = vunpack.c.l.b16 %v364
      %v511 = vunpack.c.h.b16 %v364
      %v512 = vunpack.c.l.b16 %v365
      %v513 = vunpack.c.h.b16 %v365
      %v514 = vunpack.c.l.b16 %v366
      %v515 = vunpack.c.h.b16 %v366
      %v516 = vunpack.c.l.b16 %v367
      %v517 = vunpack.c.h.b16 %v367
      %v518 = vunpack.c.l.b16 %v368
      %v519 = vunpack.c.h.b16 %v368
      %v520 = vunpack.c.l.b16 %v369
      %v521 = vunpack.c.h.b16 %v369
      %v522 = vunpack.c.l.b16 %v370
      %v523 = vunpack.c.h.b16 %v370
      %v524 = vunpack.c.l.b16 %v371
      %v525 = vunpack.c.h.b16 %v371
      %v526 = vunpack.c.l.b16 %v372
      %v527 = vunpack.c.h.b16 %v372
      %v528 = vunpack.c.l.b16 %v373
      %v529 = vunpack.c.h.b16 %v373
      %v530 = vunpack.c.l.b16 %v374
      %v531 = vunpack.c.h.b16 %v374
      %v532 = vunpack.c.l.b16 %v375
      %v533 = vunpack.c.h.b16 %v375
      %v534 = vunpack.c.l.b16 %v376
      %v535 = vunpack.c.h.b16 %v376
      %v536 = vunpack.c.l.b16 %v377
      %v537 = vunpack.c.h.b16 %v377
      %v538 = vunpack.c.l.b16 %v378
      %v539 = vunpack.c.h.b16 %v378
      %v540 = vunpack.c.l.b16 %v379
      %v541 = vunpack.c.h.b16 %v379
      %v542 = vunpack.c.l.b16 %v380
      %v543 = vunpack.c.h.b16 %v380
      %v544 = vunpack.c.l.b16 %v381
      %v545 = vunpack.c.h.b16 %v381
      %v546 = vunpack.c.l.b16 %v382
      %v547 = vunpack.c.h.b16 %v382
      %v548 = vunpack.c.l.b16 %v383
      %v549 = vunpack.c.h.b16 %v383
      %v550 = vunpack.c.l.b16 %v384
      %v551 = vunpack.c.h.b16 %v384
      %v552 = vunpack.c.l.b16 %v385
      %v553 = vunpack.c.h.b16 %v385
      %v554 = vunpack.c.l.b16 %v386
      %v555 = vunpack.c.h.b16 %v386
      %v556 = vunpack.c.l.b16 %v387
      %v557 = vunpack.c.h.b16 %v387
      %v558 = vunpack.c.l.b16 %v388
      %v559 = vunpack.c.h.b16 %v388
      %v560 = vunpack.c.l.b16 %v389
      %v561 = vunpack.c.h.b16 %v389
      %v562 = vunpack.c.l.b16 %v390
      %v563 = vunpack.c.h.b16 %v390
      %v564 = vunpack.c.l.b16 %v391
      %v565 = vunpack.c.h.b16 %v391
      %v566 = vunpack.c.l.b16 %v392
      %v567 = vunpack.c.h.b16 %v392
      %v568 = vunpack.c.l.b16 %v393
      %v569 = vunpack.c.h.b16 %v393
      %v570 = vunpack.c.l.b16 %v394
      %v571 = vunpack.c.h.b16 %v394
      %v572 = vunpack.c.l.b16 %v395
      %v573 = vunpack.c.h.b16 %v395
      %v574 = vunpack.c.l.b16 %v396
      %v575 = vunpack.c.h.b16 %v396
      %v576 = vunpack.c.l.b16 %v397
      %v577 = vunpack.c.h.b16 %v397
      %v578 = vunpack.c.l.b16 %v398
      %v579 = vunpack.c.h.b16 %v398
      %v580 = vunpack.c.l.b16 %v399
      %v581 = vunpack.c.h.b16 %v399
      %v582 = vunpack.c.l.b16 %v400
      %v583 = vunpack.c.h.b16 %v400
      %v584 = vunpack.c.l.b16 %v401
      %v585 = vunpack.c.h.b16 %v401
      %v586 = vunpack.c.l.b16 %v402
      %v587 = vunpack.c.h.b16 %v402
      %v588 = vunpack.c.l.b16 %v403
      %v589 = vunpack.c.h.b16 %v403
      %v590 = vunpack.c.l.b16 %v404
      %v591 = vunpack.c.h.b16 %v404
      %v592 = vunpack.c.l.b16 %v405
      %v593 = vunpack.c.h.b16 %v405
      %v594 = vunpack.c.l.b16 %v406
      %v595 = vunpack.c.h.b16 %v406
      %v596 = vunpack.c.l.b16 %v407
      %v597 = vunpack.c.h.b16 %v407
      %v598 = vunpack.c.l.b16 %v408
      %v599 = vunpack.c.h.b16 %v408
      %v600 = vunpack.c.l.b16 %v409
      %v601 = vunpack.c.h.b16 %v409
      %v602 = vpack.c.b16 %v478, %v474
      %v603 = vpack.c.b16 %v479, %v475
      %v604 = vpack.c.b16 %v480, %v476
      %v605 = vpack.c.b16 %v481, %v477
      %v606 = vpack.c.b16 %v486, %v482
      %v607 = vpack.c.b16 %v487, %v483
      %v608 = vpack.c.b16 %v488, %v484
      %v609 = vpack.c.b16 %v489, %v485
      %v610 = vpack.c.b16 %v494, %v490
      %v611 = vpack.c.b16 %v495, %v491
      %v612 = vpack.c.b16 %v496, %v492
      %v613 = vpack.c.b16 %v497, %v493
      %v614 = vpack.c.b16 %v502, %v498
      %v615 = vpack.c.b16 %v503, %v499
      %v616 = vpack.c.b16 %v504, %v500
      %v617 = vpack.c.b16 %v505, %v501
      %v618 = vpack.c.b16 %v510, %v506
      %v619 = vpack.c.b16 %v511, %v507
      %v620 = vpack.c.b16 %v512, %v508
      %v621 = vpack.c.b16 %v513, %v509
      %v622 = vpack.c.b16 %v518, %v514
      %v623 = vpack.c.b16 %v519, %v515
      %v624 = vpack.c.b16 %v520, %v516
      %v625 = vpack.c.b16 %v521, %v517
      %v626 = vpack.c.b16 %v526, %v522
      %v627 = vpack.c.b16 %v527, %v523
      %v628 = vpack.c.b16 %v528, %v524
      %v629 = vpack.c.b16 %v529, %v525
      %v630 = vpack.c.b16 %v534, %v530
      %v631 = vpack.c.b16 %v535, %v531
      %v632 = vpack.c.b16 %v536, %v532
      %v633 = vpack.c.b16 %v537, %v533
      %v634 = vpack.c.b16 %v542, %v538
      %v635 = vpack.c.b16 %v543, %v539
      %v636 = vpack.c.b16 %v544, %v540
      %v637 = vpack.c.b16 %v545, %v541
      %v638 = vpack.c.b16 %v550, %v546
      %v639 = vpack.c.b16 %v551, %v547
      %v640 = vpack.c.b16 %v552, %v548
      %v641 = vpack.c.b16 %v553, %v549
      %v642 = vpack.c.b16 %v558, %v554
      %v643 = vpack.c.b16 %v559, %v555
      %v644 = vpack.c.b16 %v560, %v556
      %v645 = vpack.c.b16 %v561, %v557
      %v646 = vpack.c.b16 %v566, %v562
      %v647 = vpack.c.b16 %v567, %v563
      %v648 = vpack.c.b16 %v568, %v564
      %v649 = vpack.c.b16 %v569, %v565
      %v650 = vpack.c.b16 %v574, %v570
      %v651 = vpack.c.b16 %v575, %v571
      %v652 = vpack.c.b16 %v576, %v572
      %v653 = vpack.c.b16 %v577, %v573
      %v654 = vpack.c.b16 %v582, %v578
      %v655 = vpack.c.b16 %v583, %v579
      %v656 = vpack.c.b16 %v584, %v580
      %v657 = vpack.c.b16 %v585, %v581
      %v658 = vpack.c.b16 %v590, %v586
      %v659 = vpack.c.b16 %v591, %v587
      %v660 = vpack.c.b16 %v592, %v588
      %v661 = vpack.c.b16 %v593, %v589
      %v662 = vpack.c.b16 %v598, %v594
      %v663 = vpack.c.b16 %v599, %v595
      %v664 = vpack.c.b16 %v600, %v596
      %v665 = vpack.c.b16 %v601, %v597
      %v794 = vunpack.c.l.b16 %v250
      %v795 = vunpack.c.l.b16 %v251
      %v796 = vunpack.c.l.b16 %v252
      %v797 = vunpack.c.l.b16 %v253
      %v798 = vunpack.c.l.b16 %v254
      %v799 = vunpack.c.l.b16 %v255
      %v800 = vunpack.c.l.b16 %v256
      %v801 = vunpack.c.l.b16 %v257
      %v802 = vunpack.c.l.b16 %v258
      %v803 = vunpack.c.l.b16 %v259
      %v804 = vunpack.c.l.b16 %v260
      %v805 = vunpack.c.l.b16 %v261
      %v806 = vunpack.c.l.b16 %v262
      %v807 = vunpack.c.l.b16 %v263
      %v808 = vunpack.c.l.b16 %v264
      %v809 = vunpack.c.l.b16 %v265
      %v810 = vunpack.c.l.b16 %v266
      %v811 = vunpack.c.l.b16 %v267
      %v812 = vunpack.c.l.b16 %v268
      %v813 = vunpack.c.l.b16 %v269
      %v814 = vunpack.c.l.b16 %v270
      %v815 = vunpack.c.l.b16 %v271
      %v816 = vunpack.c.l.b16 %v272
      %v817 = vunpack.c.l.b16 %v273
      %v818 = vunpack.c.l.b16 %v274
      %v819 = vunpack.c.l.b16 %v275
      %v820 = vunpack.c.l.b16 %v276
      %v821 = vunpack.c.l.b16 %v277
      %v822 = vunpack.c.l.b16 %v278
      %v823 = vunpack.c.l.b16 %v279
      %v824 = vunpack.c.l.b16 %v280
      %v825 = vunpack.c.l.b16 %v281
      %v826 = vunpack.c.l.b16 %v282
      %v827 = vunpack.c.l.b16 %v283
      %v828 = vunpack.c.l.b16 %v284
      %v829 = vunpack.c.l.b16 %v285
      %v830 = vunpack.c.l.b16 %v286
      %v831 = vunpack.c.l.b16 %v287
      %v832 = vunpack.c.l.b16 %v288
      %v833 = vunpack.c.l.b16 %v289
      %v834 = vunpack.c.l.b16 %v290
      %v835 = vunpack.c.l.b16 %v291
      %v836 = vunpack.c.l.b16 %v292
      %v837 = vunpack.c.l.b16 %v293
      %v838 = vunpack.c.l.b16 %v294
      %v839 = vunpack.c.l.b16 %v295
      %v840 = vunpack.c.l.b16 %v296
      %v841 = vunpack.c.l.b16 %v297
      %v842 = vunpack.c.l.b16 %v298
      %v843 = vunpack.c.l.b16 %v299
      %v844 = vunpack.c.l.b16 %v300
      %v845 = vunpack.c.l.b16 %v301
      %v846 = vunpack.c.l.b16 %v302
      %v847 = vunpack.c.l.b16 %v303
      %v848 = vunpack.c.l.b16 %v304
      %v849 = vunpack.c.l.b16 %v305
      %v850 = vunpack.c.l.b16 %v306
      %v851 = vunpack.c.l.b16 %v307
      %v852 = vunpack.c.l.b16 %v308
      %v853 = vunpack.c.l.b16 %v309
      %v854 = vunpack.c.l.b16 %v310
      %v855 = vunpack.c.l.b16 %v311
      %v856 = vunpack.c.l.b16 %v312
      %v857 = vunpack.c.l.b16 %v313
      %v858 = vpack.c.b16 %v795, %v794
      %v859 = vpack.c.b16 %v797, %v796
      %v860 = vpack.c.b16 %v799, %v798
      %v861 = vpack.c.b16 %v801, %v800
      %v862 = vpack.c.b16 %v803, %v802
      %v863 = vpack.c.b16 %v805, %v804
      %v864 = vpack.c.b16 %v807, %v806
      %v865 = vpack.c.b16 %v809, %v808
      %v866 = vpack.c.b16 %v811, %v810
      %v867 = vpack.c.b16 %v813, %v812
      %v868 = vpack.c.b16 %v815, %v814
      %v869 = vpack.c.b16 %v817, %v816
      %v870 = vpack.c.b16 %v819, %v818
      %v871 = vpack.c.b16 %v821, %v820
      %v872 = vpack.c.b16 %v823, %v822
      %v873 = vpack.c.b16 %v825, %v824
      %v874 = vpack.c.b16 %v827, %v826
      %v875 = vpack.c.b16 %v829, %v828
      %v876 = vpack.c.b16 %v831, %v830
      %v877 = vpack.c.b16 %v833, %v832
      %v878 = vpack.c.b16 %v835, %v834
      %v879 = vpack.c.b16 %v837, %v836
      %v880 = vpack.c.b16 %v839, %v838
      %v881 = vpack.c.b16 %v841, %v840
      %v882 = vpack.c.b16 %v843, %v842
      %v883 = vpack.c.b16 %v845, %v844
      %v884 = vpack.c.b16 %v847, %v846
      %v885 = vpack.c.b16 %v849, %v848
      %v886 = vpack.c.b16 %v851, %v850
      %v887 = vpack.c.b16 %v853, %v852
      %v888 = vpack.c.b16 %v855, %v854
      %v889 = vpack.c.b16 %v857, %v856
      %922 = vmatpush.bf16.msra.mxu0 %v865
      %923 = vmatpush.bf16.msra.mxu0 %v864
      %924 = vmatpush.bf16.msra.mxu0 %v863
      %925 = vmatpush.bf16.msra.mxu0 %v862
      %926 = vmatpush.bf16.msra.mxu0 %v861
      %927 = vmatpush.bf16.msra.mxu0 %v860
      %928 = vmatpush.bf16.msra.mxu0 %v859
      %929 = vmatpush.bf16.msra.mxu0 %v858
      %930 = vmatmul.bf16.gmra.mxu0 %v602
      %v931 = vpop.f32.mrf.mxu0
      %v932 = vadd.f32 0.0, %v931
      %v933 = vpop.f32.mrf.mxu0
      %v934 = vadd.f32 0.0, %v933
      %935 = vmatmul.bf16.gmra.mxu0 %v606
      %v936 = vpop.f32.mrf.mxu0
      %v937 = vadd.f32 0.0, %v936
      %v938 = vpop.f32.mrf.mxu0
      %v939 = vadd.f32 0.0, %v938
      %940 = vmatmul.bf16.gmra.mxu0 %v610
      %v941 = vpop.f32.mrf.mxu0
      %v942 = vadd.f32 0.0, %v941
      %v943 = vpop.f32.mrf.mxu0
      %v944 = vadd.f32 0.0, %v943
      %945 = vmatmul.bf16.gmra.mxu0 %v614
      %v946 = vpop.f32.mrf.mxu0
      %v947 = vadd.f32 0.0, %v946
      %v948 = vpop.f32.mrf.mxu0
      %v949 = vadd.f32 0.0, %v948
      %950 = vmatmul.bf16.gmra.mxu0 %v618
      %v951 = vpop.f32.mrf.mxu0
      %v952 = vadd.f32 0.0, %v951
      %v953 = vpop.f32.mrf.mxu0
      %v954 = vadd.f32 0.0, %v953
      %955 = vmatmul.bf16.gmra.mxu0 %v622
      %v956 = vpop.f32.mrf.mxu0
      %v957 = vadd.f32 0.0, %v956
      %v958 = vpop.f32.mrf.mxu0
      %v959 = vadd.f32 0.0, %v958
      %960 = vmatmul.bf16.gmra.mxu0 %v626
      %v961 = vpop.f32.mrf.mxu0
      %v962 = vadd.f32 0.0, %v961
      %v963 = vpop.f32.mrf.mxu0
      %v964 = vadd.f32 0.0, %v963
      %965 = vmatmul.bf16.gmra.mxu0 %v630
      %v966 = vpop.f32.mrf.mxu0
      %v967 = vadd.f32 0.0, %v966
      %v968 = vpop.f32.mrf.mxu0
      %v969 = vadd.f32 0.0, %v968
      %970 = vmatmul.bf16.gmra.mxu0 %v634
      %v971 = vpop.f32.mrf.mxu0
      %v972 = vadd.f32 0.0, %v971
      %v973 = vpop.f32.mrf.mxu0
      %v974 = vadd.f32 0.0, %v973
      %975 = vmatmul.bf16.gmra.mxu0 %v638
      %v976 = vpop.f32.mrf.mxu0
      %v977 = vadd.f32 0.0, %v976
      %v978 = vpop.f32.mrf.mxu0
      %v979 = vadd.f32 0.0, %v978
      %980 = vmatmul.bf16.gmra.mxu0 %v642
      %v981 = vpop.f32.mrf.mxu0
      %v982 = vadd.f32 0.0, %v981
      %v983 = vpop.f32.mrf.mxu0
      %v984 = vadd.f32 0.0, %v983
      %985 = vmatmul.bf16.gmra.mxu0 %v646
      %v986 = vpop.f32.mrf.mxu0
      %v987 = vadd.f32 0.0, %v986
      %v988 = vpop.f32.mrf.mxu0
      %v989 = vadd.f32 0.0, %v988
      %990 = vmatmul.bf16.gmra.mxu0 %v650
      %v991 = vpop.f32.mrf.mxu0
      %v992 = vadd.f32 0.0, %v991
      %v993 = vpop.f32.mrf.mxu0
      %v994 = vadd.f32 0.0, %v993
      %995 = vmatmul.bf16.gmra.mxu0 %v654
      %v996 = vpop.f32.mrf.mxu0
      %v997 = vadd.f32 0.0, %v996
      %v998 = vpop.f32.mrf.mxu0
      %v999 = vadd.f32 0.0, %v998
      %1000 = vmatmul.bf16.gmra.mxu0 %v658
      %v1001 = vpop.f32.mrf.mxu0
      %v1002 = vadd.f32 0.0, %v1001
      %v1003 = vpop.f32.mrf.mxu0
      %v1004 = vadd.f32 0.0, %v1003
      %1005 = vmatmul.bf16.gmra.mxu0 %v662
      %v1006 = vpop.f32.mrf.mxu0
      %v1007 = vadd.f32 0.0, %v1006
      %v1008 = vpop.f32.mrf.mxu0
      %v1009 = vadd.f32 0.0, %v1008
      %1010 = vdwg.mxu0
      %1011 = vmatpush.bf16.msra.mxu0 %v873
      %1012 = vmatpush.bf16.msra.mxu0 %v872
      %1013 = vmatpush.bf16.msra.mxu0 %v871
      %1014 = vmatpush.bf16.msra.mxu0 %v870
      %1015 = vmatpush.bf16.msra.mxu0 %v869
      %1016 = vmatpush.bf16.msra.mxu0 %v868
      %1017 = vmatpush.bf16.msra.mxu0 %v867
      %1018 = vmatpush.bf16.msra.mxu0 %v866
      %1019 = vmatmul.bf16.gmra.mxu0 %v603
      %v1020 = vpop.f32.mrf.mxu0
      %v1021 = vadd.f32 %v932, %v1020
      %v1022 = vpop.f32.mrf.mxu0
      %v1023 = vadd.f32 %v934, %v1022
      %1024 = vmatmul.bf16.gmra.mxu0 %v607
      %v1025 = vpop.f32.mrf.mxu0
      %v1026 = vadd.f32 %v937, %v1025
      %v1027 = vpop.f32.mrf.mxu0
      %v1028 = vadd.f32 %v939, %v1027
      %1029 = vmatmul.bf16.gmra.mxu0 %v611
      %v1030 = vpop.f32.mrf.mxu0
      %v1031 = vadd.f32 %v942, %v1030
      %v1032 = vpop.f32.mrf.mxu0
      %v1033 = vadd.f32 %v944, %v1032
      %1034 = vmatmul.bf16.gmra.mxu0 %v615
      %v1035 = vpop.f32.mrf.mxu0
      %v1036 = vadd.f32 %v947, %v1035
      %v1037 = vpop.f32.mrf.mxu0
      %v1038 = vadd.f32 %v949, %v1037
      %1039 = vmatmul.bf16.gmra.mxu0 %v619
      %v1040 = vpop.f32.mrf.mxu0
      %v1041 = vadd.f32 %v952, %v1040
      %v1042 = vpop.f32.mrf.mxu0
      %v1043 = vadd.f32 %v954, %v1042
      %1044 = vmatmul.bf16.gmra.mxu0 %v623
      %v1045 = vpop.f32.mrf.mxu0
      %v1046 = vadd.f32 %v957, %v1045
      %v1047 = vpop.f32.mrf.mxu0
      %v1048 = vadd.f32 %v959, %v1047
      %1049 = vmatmul.bf16.gmra.mxu0 %v627
      %v1050 = vpop.f32.mrf.mxu0
      %v1051 = vadd.f32 %v962, %v1050
      %v1052 = vpop.f32.mrf.mxu0
      %v1053 = vadd.f32 %v964, %v1052
      %1054 = vmatmul.bf16.gmra.mxu0 %v631
      %v1055 = vpop.f32.mrf.mxu0
      %v1056 = vadd.f32 %v967, %v1055
      %v1057 = vpop.f32.mrf.mxu0
      %v1058 = vadd.f32 %v969, %v1057
      %1059 = vmatmul.bf16.gmra.mxu0 %v635
      %v1060 = vpop.f32.mrf.mxu0
      %v1061 = vadd.f32 %v972, %v1060
      %v1062 = vpop.f32.mrf.mxu0
      %v1063 = vadd.f32 %v974, %v1062
      %1064 = vmatmul.bf16.gmra.mxu0 %v639
      %v1065 = vpop.f32.mrf.mxu0
      %v1066 = vadd.f32 %v977, %v1065
      %v1067 = vpop.f32.mrf.mxu0
      %v1068 = vadd.f32 %v979, %v1067
      %1069 = vmatmul.bf16.gmra.mxu0 %v643
      %v1070 = vpop.f32.mrf.mxu0
      %v1071 = vadd.f32 %v982, %v1070
      %v1072 = vpop.f32.mrf.mxu0
      %v1073 = vadd.f32 %v984, %v1072
      %1074 = vmatmul.bf16.gmra.mxu0 %v647
      %v1075 = vpop.f32.mrf.mxu0
      %v1076 = vadd.f32 %v987, %v1075
      %v1077 = vpop.f32.mrf.mxu0
      %v1078 = vadd.f32 %v989, %v1077
      %1079 = vmatmul.bf16.gmra.mxu0 %v651
      %v1080 = vpop.f32.mrf.mxu0
      %v1081 = vadd.f32 %v992, %v1080
      %v1082 = vpop.f32.mrf.mxu0
      %v1083 = vadd.f32 %v994, %v1082
      %1084 = vmatmul.bf16.gmra.mxu0 %v655
      %v1085 = vpop.f32.mrf.mxu0
      %v1086 = vadd.f32 %v997, %v1085
      %v1087 = vpop.f32.mrf.mxu0
      %v1088 = vadd.f32 %v999, %v1087
      %1089 = vmatmul.bf16.gmra.mxu0 %v659
      %v1090 = vpop.f32.mrf.mxu0
      %v1091 = vadd.f32 %v1002, %v1090
      %v1092 = vpop.f32.mrf.mxu0
      %v1093 = vadd.f32 %v1004, %v1092
      %1094 = vmatmul.bf16.gmra.mxu0 %v663
      %v1095 = vpop.f32.mrf.mxu0
      %v1096 = vadd.f32 %v1007, %v1095
      %v1097 = vpop.f32.mrf.mxu0
      %v1098 = vadd.f32 %v1009, %v1097
      %1099 = vdwg.mxu0
      %1100 = vmatpush.bf16.msra.mxu0 %v881
      %1101 = vmatpush.bf16.msra.mxu0 %v880
      %1102 = vmatpush.bf16.msra.mxu0 %v879
      %1103 = vmatpush.bf16.msra.mxu0 %v878
      %1104 = vmatpush.bf16.msra.mxu0 %v877
      %1105 = vmatpush.bf16.msra.mxu0 %v876
      %1106 = vmatpush.bf16.msra.mxu0 %v875
      %1107 = vmatpush.bf16.msra.mxu0 %v874
      %1108 = vmatmul.bf16.gmra.mxu0 %v604
      %v1109 = vpop.f32.mrf.mxu0
      %v1110 = vadd.f32 %v1021, %v1109
      %v1111 = vpop.f32.mrf.mxu0
      %v1112 = vadd.f32 %v1023, %v1111
      %1113 = vmatmul.bf16.gmra.mxu0 %v608
      %v1114 = vpop.f32.mrf.mxu0
      %v1115 = vadd.f32 %v1026, %v1114
      %v1116 = vpop.f32.mrf.mxu0
      %v1117 = vadd.f32 %v1028, %v1116
      %1118 = vmatmul.bf16.gmra.mxu0 %v612
      %v1119 = vpop.f32.mrf.mxu0
      %v1120 = vadd.f32 %v1031, %v1119
      %v1121 = vpop.f32.mrf.mxu0
      %v1122 = vadd.f32 %v1033, %v1121
      %1123 = vmatmul.bf16.gmra.mxu0 %v616
      %v1124 = vpop.f32.mrf.mxu0
      %v1125 = vadd.f32 %v1036, %v1124
      %v1126 = vpop.f32.mrf.mxu0
      %v1127 = vadd.f32 %v1038, %v1126
      %1128 = vmatmul.bf16.gmra.mxu0 %v620
      %v1129 = vpop.f32.mrf.mxu0
      %v1130 = vadd.f32 %v1041, %v1129
      %v1131 = vpop.f32.mrf.mxu0
      %v1132 = vadd.f32 %v1043, %v1131
      %1133 = vmatmul.bf16.gmra.mxu0 %v624
      %v1134 = vpop.f32.mrf.mxu0
      %v1135 = vadd.f32 %v1046, %v1134
      %v1136 = vpop.f32.mrf.mxu0
      %v1137 = vadd.f32 %v1048, %v1136
      %1138 = vmatmul.bf16.gmra.mxu0 %v628
      %v1139 = vpop.f32.mrf.mxu0
      %v1140 = vadd.f32 %v1051, %v1139
      %v1141 = vpop.f32.mrf.mxu0
      %v1142 = vadd.f32 %v1053, %v1141
      %1143 = vmatmul.bf16.gmra.mxu0 %v632
      %v1144 = vpop.f32.mrf.mxu0
      %v1145 = vadd.f32 %v1056, %v1144
      %v1146 = vpop.f32.mrf.mxu0
      %v1147 = vadd.f32 %v1058, %v1146
      %1148 = vmatmul.bf16.gmra.mxu0 %v636
      %v1149 = vpop.f32.mrf.mxu0
      %v1150 = vadd.f32 %v1061, %v1149
      %v1151 = vpop.f32.mrf.mxu0
      %v1152 = vadd.f32 %v1063, %v1151
      %1153 = vmatmul.bf16.gmra.mxu0 %v640
      %v1154 = vpop.f32.mrf.mxu0
      %v1155 = vadd.f32 %v1066, %v1154
      %v1156 = vpop.f32.mrf.mxu0
      %v1157 = vadd.f32 %v1068, %v1156
      %1158 = vmatmul.bf16.gmra.mxu0 %v644
      %v1159 = vpop.f32.mrf.mxu0
      %v1160 = vadd.f32 %v1071, %v1159
      %v1161 = vpop.f32.mrf.mxu0
      %v1162 = vadd.f32 %v1073, %v1161
      %1163 = vmatmul.bf16.gmra.mxu0 %v648
      %v1164 = vpop.f32.mrf.mxu0
      %v1165 = vadd.f32 %v1076, %v1164
      %v1166 = vpop.f32.mrf.mxu0
      %v1167 = vadd.f32 %v1078, %v1166
      %1168 = vmatmul.bf16.gmra.mxu0 %v652
      %v1169 = vpop.f32.mrf.mxu0
      %v1170 = vadd.f32 %v1081, %v1169
      %v1171 = vpop.f32.mrf.mxu0
      %v1172 = vadd.f32 %v1083, %v1171
      %1173 = vmatmul.bf16.gmra.mxu0 %v656
      %v1174 = vpop.f32.mrf.mxu0
      %v1175 = vadd.f32 %v1086, %v1174
      %v1176 = vpop.f32.mrf.mxu0
      %v1177 = vadd.f32 %v1088, %v1176
      %1178 = vmatmul.bf16.gmra.mxu0 %v660
      %v1179 = vpop.f32.mrf.mxu0
      %v1180 = vadd.f32 %v1091, %v1179
      %v1181 = vpop.f32.mrf.mxu0
      %v1182 = vadd.f32 %v1093, %v1181
      %1183 = vmatmul.bf16.gmra.mxu0 %v664
      %v1184 = vpop.f32.mrf.mxu0
      %v1185 = vadd.f32 %v1096, %v1184
      %v1186 = vpop.f32.mrf.mxu0
      %v1187 = vadd.f32 %v1098, %v1186
      %1188 = vdwg.mxu0
      %1189 = vmatpush.bf16.msra.mxu0 %v889
      %1190 = vmatpush.bf16.msra.mxu0 %v888
      %1191 = vmatpush.bf16.msra.mxu0 %v887
      %1192 = vmatpush.bf16.msra.mxu0 %v886
      %1193 = vmatpush.bf16.msra.mxu0 %v885
      %1194 = vmatpush.bf16.msra.mxu0 %v884
      %1195 = vmatpush.bf16.msra.mxu0 %v883
      %1196 = vmatpush.bf16.msra.mxu0 %v882
      %1197 = vmatmul.bf16.gmra.mxu0 %v605
      %v1198 = vpop.f32.mrf.mxu0
      %v1199 = vadd.f32 %v1110, %v1198
      %v1200 = vpop.f32.mrf.mxu0
      %v1201 = vadd.f32 %v1112, %v1200
      %1202 = vmatmul.bf16.gmra.mxu0 %v609
      %v1203 = vpop.f32.mrf.mxu0
      %v1204 = vadd.f32 %v1115, %v1203
      %v1205 = vpop.f32.mrf.mxu0
      %v1206 = vadd.f32 %v1117, %v1205
      %1207 = vmatmul.bf16.gmra.mxu0 %v613
      %v1208 = vpop.f32.mrf.mxu0
      %v1209 = vadd.f32 %v1120, %v1208
      %v1210 = vpop.f32.mrf.mxu0
      %v1211 = vadd.f32 %v1122, %v1210
      %1212 = vmatmul.bf16.gmra.mxu0 %v617
      %v1213 = vpop.f32.mrf.mxu0
      %v1214 = vadd.f32 %v1125, %v1213
      %v1215 = vpop.f32.mrf.mxu0
      %v1216 = vadd.f32 %v1127, %v1215
      %1217 = vmatmul.bf16.gmra.mxu0 %v621
      %v1218 = vpop.f32.mrf.mxu0
      %v1219 = vadd.f32 %v1130, %v1218
      %v1220 = vpop.f32.mrf.mxu0
      %v1221 = vadd.f32 %v1132, %v1220
      %1222 = vmatmul.bf16.gmra.mxu0 %v625
      %v1223 = vpop.f32.mrf.mxu0
      %v1224 = vadd.f32 %v1135, %v1223
      %v1225 = vpop.f32.mrf.mxu0
      %v1226 = vadd.f32 %v1137, %v1225
      %1227 = vmatmul.bf16.gmra.mxu0 %v629
      %v1228 = vpop.f32.mrf.mxu0
      %v1229 = vadd.f32 %v1140, %v1228
      %v1230 = vpop.f32.mrf.mxu0
      %v1231 = vadd.f32 %v1142, %v1230
      %1232 = vmatmul.bf16.gmra.mxu0 %v633
      %v1233 = vpop.f32.mrf.mxu0
      %v1234 = vadd.f32 %v1145, %v1233
      %v1235 = vpop.f32.mrf.mxu0
      %v1236 = vadd.f32 %v1147, %v1235
      %1237 = vmatmul.bf16.gmra.mxu0 %v637
      %v1238 = vpop.f32.mrf.mxu0
      %v1239 = vadd.f32 %v1150, %v1238
      %v1240 = vpop.f32.mrf.mxu0
      %v1241 = vadd.f32 %v1152, %v1240
      %1242 = vmatmul.bf16.gmra.mxu0 %v641
      %v1243 = vpop.f32.mrf.mxu0
      %v1244 = vadd.f32 %v1155, %v1243
      %v1245 = vpop.f32.mrf.mxu0
      %v1246 = vadd.f32 %v1157, %v1245
      %1247 = vmatmul.bf16.gmra.mxu0 %v645
      %v1248 = vpop.f32.mrf.mxu0
      %v1249 = vadd.f32 %v1160, %v1248
      %v1250 = vpop.f32.mrf.mxu0
      %v1251 = vadd.f32 %v1162, %v1250
      %1252 = vmatmul.bf16.gmra.mxu0 %v649
      %v1253 = vpop.f32.mrf.mxu0
      %v1254 = vadd.f32 %v1165, %v1253
      %v1255 = vpop.f32.mrf.mxu0
      %v1256 = vadd.f32 %v1167, %v1255
      %1257 = vmatmul.bf16.gmra.mxu0 %v653
      %v1258 = vpop.f32.mrf.mxu0
      %v1259 = vadd.f32 %v1170, %v1258
      %v1260 = vpop.f32.mrf.mxu0
      %v1261 = vadd.f32 %v1172, %v1260
      %1262 = vmatmul.bf16.gmra.mxu0 %v657
      %v1263 = vpop.f32.mrf.mxu0
      %v1264 = vadd.f32 %v1175, %v1263
      %v1265 = vpop.f32.mrf.mxu0
      %v1266 = vadd.f32 %v1177, %v1265
      %1267 = vmatmul.bf16.gmra.mxu0 %v661
      %v1268 = vpop.f32.mrf.mxu0
      %v1269 = vadd.f32 %v1180, %v1268
      %v1270 = vpop.f32.mrf.mxu0
      %v1271 = vadd.f32 %v1182, %v1270
      %1272 = vmatmul.bf16.gmra.mxu0 %v665
      %v1273 = vpop.f32.mrf.mxu0
      %v1274 = vadd.f32 %v1185, %v1273
      %v1275 = vpop.f32.mrf.mxu0
      %v1276 = vadd.f32 %v1187, %v1275
      %1277 = vdwg.mxu0
      %v1278 = vadd.f32 %v314, %v1199
      %v1279 = vadd.f32 %v315, %v1201
      %v1280 = vadd.f32 %v316, %v1204
      %v1281 = vadd.f32 %v317, %v1206
      %v1282 = vadd.f32 %v318, %v1209
      %v1283 = vadd.f32 %v319, %v1211
      %v1284 = vadd.f32 %v320, %v1214
      %v1285 = vadd.f32 %v321, %v1216
      %v1286 = vadd.f32 %v322, %v1219
      %v1287 = vadd.f32 %v323, %v1221
      %v1288 = vadd.f32 %v324, %v1224
      %v1289 = vadd.f32 %v325, %v1226
      %v1290 = vadd.f32 %v326, %v1229
      %v1291 = vadd.f32 %v327, %v1231
      %v1292 = vadd.f32 %v328, %v1234
      %v1293 = vadd.f32 %v329, %v1236
      %v1294 = vadd.f32 %v330, %v1239
      %v1295 = vadd.f32 %v331, %v1241
      %v1296 = vadd.f32 %v332, %v1244
      %v1297 = vadd.f32 %v333, %v1246
      %v1298 = vadd.f32 %v334, %v1249
      %v1299 = vadd.f32 %v335, %v1251
      %v1300 = vadd.f32 %v336, %v1254
      %v1301 = vadd.f32 %v337, %v1256
      %v1302 = vadd.f32 %v338, %v1259
      %v1303 = vadd.f32 %v339, %v1261
      %v1304 = vadd.f32 %v340, %v1264
      %v1305 = vadd.f32 %v341, %v1266
      %v1306 = vadd.f32 %v342, %v1269
      %v1307 = vadd.f32 %v343, %v1271
      %v1308 = vadd.f32 %v344, %v1274
      %v1309 = vadd.f32 %v345, %v1276
      %1310 = vst [vmem:[#allocation2] sm:$0xff] %v1278
      %1311 = vst [vmem:[#allocation2 + $0x8] sm:$0xff] %v1279
      %1312 = vst [vmem:[#allocation2 + $0x10] sm:$0xff] %v1280
      %1313 = vst [vmem:[#allocation2 + $0x18] sm:$0xff] %v1281
      %1314 = vst [vmem:[#allocation2 + $0x20] sm:$0xff] %v1282
      %1315 = vst [vmem:[#allocation2 + $0x28] sm:$0xff] %v1283
      %1316 = vst [vmem:[#allocation2 + $0x30] sm:$0xff] %v1284
      %1317 = vst [vmem:[#allocation2 + $0x38] sm:$0xff] %v1285
      %1318 = vst [vmem:[#allocation2 + $0x40] sm:$0xff] %v1286
      %1319 = vst [vmem:[#allocation2 + $0x48] sm:$0xff] %v1287
      %1320 = vst [vmem:[#allocation2 + $0x50] sm:$0xff] %v1288
      %1321 = vst [vmem:[#allocation2 + $0x58] sm:$0xff] %v1289
      %1322 = vst [vmem:[#allocation2 + $0x60] sm:$0xff] %v1290
      %1323 = vst [vmem:[#allocation2 + $0x68] sm:$0xff] %v1291
      %1324 = vst [vmem:[#allocation2 + $0x70] sm:$0xff] %v1292
      %1325 = vst [vmem:[#allocation2 + $0x78] sm:$0xff] %v1293
      %1326 = vst [vmem:[#allocation2 + $0x80] sm:$0xff] %v1294
      %1327 = vst [vmem:[#allocation2 + $0x88] sm:$0xff] %v1295
      %1328 = vst [vmem:[#allocation2 + $0x90] sm:$0xff] %v1296
      %1329 = vst [vmem:[#allocation2 + $0x98] sm:$0xff] %v1297
      %1330 = vst [vmem:[#allocation2 + $0xa0] sm:$0xff] %v1298
      %1331 = vst [vmem:[#allocation2 + $0xa8] sm:$0xff] %v1299
      %1332 = vst [vmem:[#allocation2 + $0xb0] sm:$0xff] %v1300
      %1333 = vst [vmem:[#allocation2 + $0xb8] sm:$0xff] %v1301
      %1334 = vst [vmem:[#allocation2 + $0xc0] sm:$0xff] %v1302
      %1335 = vst [vmem:[#allocation2 + $0xc8] sm:$0xff] %v1303
      %1336 = vst [vmem:[#allocation2 + $0xd0] sm:$0xff] %v1304
      %1337 = vst [vmem:[#allocation2 + $0xd8] sm:$0xff] %v1305
      %1338 = vst [vmem:[#allocation2 + $0xe0] sm:$0xff] %v1306
      %1339 = vst [vmem:[#allocation2 + $0xe8] sm:$0xff] %v1307
      %1340 = vst [vmem:[#allocation2 + $0xf0] sm:$0xff] %v1308
      %1341 = vst [vmem:[#allocation2 + $0xf8] sm:$0xff] %v1309
      // Predicated region
      $region37: #{graph_convolution.3} parent=31 // pred_check
        %p1342 = pneg %p205
      $region38: #{graph_convolution.3} parent=31 // pred_check_branch
        %1344 = sbr.rel (%p1342) target = $region40
      $region39: #{graph_convolution.3} parent=31 // pred_region
        %v1345 = vld [vmem:[#allocation2] sm:$0xff]
        %v1346 = vld [vmem:[#allocation2 + $0x8] sm:$0xff]
        %v1347 = vld [vmem:[#allocation2 + $0x10] sm:$0xff]
        %v1348 = vld [vmem:[#allocation2 + $0x18] sm:$0xff]
        %v1349 = vld [vmem:[#allocation2 + $0x20] sm:$0xff]
        %v1350 = vld [vmem:[#allocation2 + $0x28] sm:$0xff]
        %v1351 = vld [vmem:[#allocation2 + $0x30] sm:$0xff]
        %v1352 = vld [vmem:[#allocation2 + $0x38] sm:$0xff]
        %v1353 = vld [vmem:[#allocation2 + $0x40] sm:$0xff]
        %v1354 = vld [vmem:[#allocation2 + $0x48] sm:$0xff]
        %v1355 = vld [vmem:[#allocation2 + $0x50] sm:$0xff]
        %v1356 = vld [vmem:[#allocation2 + $0x58] sm:$0xff]
        %v1357 = vld [vmem:[#allocation2 + $0x60] sm:$0xff]
        %v1358 = vld [vmem:[#allocation2 + $0x68] sm:$0xff]
        %v1359 = vld [vmem:[#allocation2 + $0x70] sm:$0xff]
        %v1360 = vld [vmem:[#allocation2 + $0x78] sm:$0xff]
        %v1361 = vld [vmem:[#allocation2 + $0x80] sm:$0xff]
        %v1362 = vld [vmem:[#allocation2 + $0x88] sm:$0xff]
        %v1363 = vld [vmem:[#allocation2 + $0x90] sm:$0xff]
        %v1364 = vld [vmem:[#allocation2 + $0x98] sm:$0xff]
        %v1365 = vld [vmem:[#allocation2 + $0xa0] sm:$0xff]
        %v1366 = vld [vmem:[#allocation2 + $0xa8] sm:$0xff]
        %v1367 = vld [vmem:[#allocation2 + $0xb0] sm:$0xff]
        %v1368 = vld [vmem:[#allocation2 + $0xb8] sm:$0xff]
        %v1369 = vld [vmem:[#allocation2 + $0xc0] sm:$0xff]
        %v1370 = vld [vmem:[#allocation2 + $0xc8] sm:$0xff]
        %v1371 = vld [vmem:[#allocation2 + $0xd0] sm:$0xff]
        %v1372 = vld [vmem:[#allocation2 + $0xd8] sm:$0xff]
        %v1373 = vld [vmem:[#allocation2 + $0xe0] sm:$0xff]
        %v1374 = vld [vmem:[#allocation2 + $0xe8] sm:$0xff]
        %v1375 = vld [vmem:[#allocation2 + $0xf0] sm:$0xff]
        %v1376 = vld [vmem:[#allocation2 + $0xf8] sm:$0xff]
        %1377 = vst [vmem:[%s203] sm:$0xff] %v1345
        %1378 = vst [vmem:[%s203 + $0x8] sm:$0xff] %v1346
        %1379 = vst [vmem:[%s203 + $0x10] sm:$0xff] %v1347
        %1380 = vst [vmem:[%s203 + $0x18] sm:$0xff] %v1348
        %1381 = vst [vmem:[%s203 + $0x20] sm:$0xff] %v1349
        %1382 = vst [vmem:[%s203 + $0x28] sm:$0xff] %v1350
        %1383 = vst [vmem:[%s203 + $0x30] sm:$0xff] %v1351
        %1384 = vst [vmem:[%s203 + $0x38] sm:$0xff] %v1352
        %1385 = vst [vmem:[%s203 + $0x40] sm:$0xff] %v1353
        %1386 = vst [vmem:[%s203 + $0x48] sm:$0xff] %v1354
        %1387 = vst [vmem:[%s203 + $0x50] sm:$0xff] %v1355
        %1388 = vst [vmem:[%s203 + $0x58] sm:$0xff] %v1356
        %1389 = vst [vmem:[%s203 + $0x60] sm:$0xff] %v1357
        %1390 = vst [vmem:[%s203 + $0x68] sm:$0xff] %v1358
        %1391 = vst [vmem:[%s203 + $0x70] sm:$0xff] %v1359
        %1392 = vst [vmem:[%s203 + $0x78] sm:$0xff] %v1360
        %1393 = vst [vmem:[%s203 + $0x80] sm:$0xff] %v1361
        %1394 = vst [vmem:[%s203 + $0x88] sm:$0xff] %v1362
        %1395 = vst [vmem:[%s203 + $0x90] sm:$0xff] %v1363
        %1396 = vst [vmem:[%s203 + $0x98] sm:$0xff] %v1364
        %1397 = vst [vmem:[%s203 + $0xa0] sm:$0xff] %v1365
        %1398 = vst [vmem:[%s203 + $0xa8] sm:$0xff] %v1366
        %1399 = vst [vmem:[%s203 + $0xb0] sm:$0xff] %v1367
        %1400 = vst [vmem:[%s203 + $0xb8] sm:$0xff] %v1368
        %1401 = vst [vmem:[%s203 + $0xc0] sm:$0xff] %v1369
        %1402 = vst [vmem:[%s203 + $0xc8] sm:$0xff] %v1370
        %1403 = vst [vmem:[%s203 + $0xd0] sm:$0xff] %v1371
        %1404 = vst [vmem:[%s203 + $0xd8] sm:$0xff] %v1372
        %1405 = vst [vmem:[%s203 + $0xe0] sm:$0xff] %v1373
        %1406 = vst [vmem:[%s203 + $0xe8] sm:$0xff] %v1374
        %1407 = vst [vmem:[%s203 + $0xf0] sm:$0xff] %v1375
        %1408 = vst [vmem:[%s203 + $0xf8] sm:$0xff] %v1376
      $region40: #{graph_convolution.3} parent=31 // pred_fallthru
        _
      %s1409 = smul.u32 32, %s18
      %p1410 = scmp.lt.s32.totalorder %s1409, 63
      %s1411 = scalar_select %p1410, %s1409, 63
      %s1412 = smul.addr %s1411, 8
      %s1413 = scalar_lea.vmem %s3, %s1412
      // Predicated region
      $region41: #{graph_convolution.3} parent=31 // pred_check
        %p1414 = pneg %p114
      $region42: #{graph_convolution.3} parent=31 // pred_check_branch
        %1416 = sbr.rel (%p1414) target = $region44
      $region43: #{graph_convolution.3} parent=31 // pred_region
        %s1417 = smul.u32 32, %s18
      $region44: #{graph_convolution.3} parent=31 // pred_fallthru
        _
    $region32: #{graph_convolution.3} parent=5 // pred_fallthru
      _
    %p1418 = scmp.le.s32.totalorder 2, %s9
    // Predicated region
    $region45: #{graph_convolution.3} parent=5 // pred_check
      %p1419 = pneg %p1418
    $region46: #{graph_convolution.3} parent=5 // pred_check_branch
      %1421 = sbr.rel (%p1419) target = $region48
    $region47: #{graph_convolution.3} parent=5 // pred_region
      %s1422 = ssub.s32 %s9, 2
      // Predicated region
      $region49: #{graph_convolution.3} parent=47 // pred_check
        %p1423 = pneg %p120
      $region50: #{graph_convolution.3} parent=47 // pred_check_branch
        %1425 = sbr.rel (%p1423) target = $region52
      $region51: #{graph_convolution.3} parent=47 // pred_region
        %s1426 = smul.u32 32, %s20
        %p1427 = scmp.lt.s32.totalorder %s1426, 63
        %s1428 = scalar_select %p1427, %s1426, 63
        %s1429 = smul.addr %s1428, 8
        %s1430 = scalar_lea.vmem %s3, %s1429
      $region52: #{graph_convolution.3} parent=47 // pred_fallthru
        _
    $region48: #{graph_convolution.3} parent=5 // pred_fallthru
      _
  $region6: #{graph_convolution.3} parent=0 // loop_footer
    %s13 = sadd.s32 1, %s9
  $region7: #{graph_convolution.3} parent=0 // loop_footer_branch
    %8 = sbr.rel target = $region3
  $region8: #{graph_convolution.3} parent=0 // loop_exit
    _

</llo_original>
